<compile_context>
chip_gen: v7x
topology: tpu7x:2x2x1
jax: 0.10.0
libtpu: 0.0.40
codegen_flags: <defaults>
</compile_context>

<pallas_src>
import numpy as np
import jax
import jax.numpy as jnp
from jax.experimental import pallas as pl
from jax.experimental.pallas import tpu as pltpu

_HIGHEST = jax.lax.Precision.HIGHEST


def _vanilla_attention_kernel(q_ref, kpt_ref, v_ref, wq_ref, bq_ref, w_ref,
                              sb_ref, out_ref, score_ref):
    # q_ref    : (tq, d_in)    tile of query rows
    # kpt_ref  : (d_out, N2)   0.5 * (Wk @ k^T + bk), precomputed + resident
    # v_ref    : (N2, d_v)     full value matrix, resident
    # wq_ref   : (d_in, d_out) pre-transposed q projection
    # bq_ref   : (1, d_out)
    # w_ref    : (d_out,)      scoring vector in SMEM (scalar reads)
    # sb_ref   : (1,)          folded bias = bw + 0.5*sum(w), SMEM
    # out_ref  : (tq, d_v)
    # score_ref: (tq, N2)
    d_out = wq_ref.shape[1]
    tq = q_ref.shape[0]
    n2 = kpt_ref.shape[1]

    # Query projection on the MXU (f32 accumulate). Halve once (tiny (tq, d_out) tensor)
    # so the per-head loop works directly on z/2:  sigmoid(z) = 0.5*tanh(z/2) + 0.5.
    qp_half = 0.5 * (jnp.dot(q_ref[...], wq_ref[...],
                             preferred_element_type=jnp.float32,
                             precision=_HIGHEST) + bq_ref[...])          # (tq, d_out)
    kpt_half = kpt_ref[...]                                              # (d_out, N2)

    # Lane-dense per-head accumulation (N2 on the 128-lane axis):
    #   acc += w[h] * tanh(qp/2[:, h] + kp/2[h, :])
    # Fully unrolled static loop so the LLO scheduler interleaves EUP tanh pushes with
    # the VPU FMAs across iterations.
    acc = jnp.zeros((tq, n2), jnp.float32)
    for h in range(d_out):
        z_half = qp_half[:, h:h + 1] + kpt_half[h:h + 1, :]              # (tq, N2)
        acc = acc + w_ref[h] * jnp.tanh(z_half)                          # EUP + VPU
    score = 0.5 * acc + sb_ref[0]                                        # pre-softmax

    # Row softmax with deferred normalization: divide (tq, d_v), not (tq, N2).
    m = jnp.max(score, axis=-1, keepdims=True)
    e = jnp.exp(score - m)
    denom = jnp.sum(e, axis=-1, keepdims=True)
    out_un = jnp.dot(e, v_ref[...], preferred_element_type=jnp.float32,
                     precision=_HIGHEST)                                 # (tq, d_v)
    out = out_un / denom

    out_ref[...] = out.astype(out_ref.dtype)
    score_ref[...] = score.astype(score_ref.dtype)


def _round_up(x, m):
    return ((x + m - 1) // m) * m


def vanilla_attention(q, k, v, wq, bq, wk, bk, w, bw, *, tq_max=256):
    """q:(N1,d_q_in) k:(N2,d_k_in) v:(N2,d_v); weights in PyTorch nn.Linear layout."""
    N1, d_q_in = q.shape
    N2, d_k_in = k.shape
    d_v = v.shape[-1]
    d_out = wq.shape[0]
    assert wk.shape[0] == d_out, "d_q_out must equal d_k_out"

    f32 = jnp.float32
    q = jnp.asarray(q)
    k = jnp.asarray(k)
    v = jnp.asarray(v)

    # One-time glue outside the per-tile kernel:
    #  * hoisted k projection, already transposed to (d_out, N2) so kpt[h, :] is a cheap
    #    sublane-broadcast row; the 0.5 factor implements sigmoid(z)=0.5*tanh(z/2)+0.5.
    kpt_half = 0.5 * (jnp.dot(jnp.asarray(wk).astype(f32), k.T.astype(f32),
                              precision=_HIGHEST)
                      + jnp.asarray(bk).astype(f32).reshape(d_out, 1))   # (d_out, N2)
    wq_t = jnp.asarray(wq).astype(f32).T                                 # (d_q_in, d_out)
    bq2 = jnp.asarray(bq).astype(f32).reshape(1, d_out)
    w1 = jnp.asarray(w).astype(f32).reshape(d_out)                       # SMEM vector
    sb = (jnp.asarray(bw).astype(f32).reshape(()) + 0.5 * jnp.sum(w1)).reshape(1)

    # Query-tile size: give the grid >= 2 "parallel" steps when N1 allows (v7x megacore),
    # keep the sublane axis a multiple of 8, cap so the per-tile VMEM budget stays small.
    if N1 <= 8:
        tq = N1
    else:
        tq = min(tq_max, max(8, _round_up(-(-N1 // 2), 8)))
    grid = (pl.cdiv(N1, tq),)

    # Explicit VMEM budget (f32 bytes): double-buffered q/out/score, resident kpt/v/Wq/bq,
    # plus a handful of live (tq, N2) intermediates inside the per-head loop.
    est_bytes = 4 * (2 * tq * d_q_in + 2 * d_out * N2 + 2 * N2 * d_v
                     + 2 * d_q_in * d_out + 2 * d_out
                     + 2 * tq * d_v + 2 * tq * N2
                     + 6 * tq * N2 + 2 * tq * d_out)
    vmem_limit = int(min(max(2 * est_bytes, 32 * 1024 * 1024), 100 * 1024 * 1024))

    out, score = pl.pallas_call(
        _vanilla_attention_kernel,
        out_shape=(
            jax.ShapeDtypeStruct((N1, d_v), q.dtype),
            jax.ShapeDtypeStruct((N1, N2), jnp.float32),
        ),
        grid_spec=pltpu.PrefetchScalarGridSpec(
            num_scalar_prefetch=0,
            grid=grid,
            in_specs=[
                pl.BlockSpec((tq, d_q_in), lambda i: (i, 0)),          # q tile
                pl.BlockSpec((d_out, N2), lambda i: (0, 0)),           # kpT/2 (resident)
                pl.BlockSpec((N2, d_v), lambda i: (0, 0)),             # v (resident)
                pl.BlockSpec((d_q_in, d_out), lambda i: (0, 0)),       # Wq^T
                pl.BlockSpec((1, d_out), lambda i: (0, 0)),            # bq
                pl.BlockSpec(memory_space=pltpu.MemorySpace.SMEM),     # w (per-head scalars)
                pl.BlockSpec(memory_space=pltpu.MemorySpace.SMEM),     # folded score bias
            ],
            out_specs=(
                pl.BlockSpec((tq, d_v), lambda i: (i, 0)),
                pl.BlockSpec((tq, N2), lambda i: (i, 0)),
            ),
        ),
        compiler_params=pltpu.CompilerParams(
            dimension_semantics=("parallel",),
            vmem_limit_bytes=vmem_limit,
        ),
    )(q, kpt_half, v, wq_t, bq2, w1, sb)
    return out, score


def _reference(q, k, v, wq, bq, wk, bk, w, bw):
    """Pure-JAX reference matching the PyTorch forward."""
    qp = jnp.dot(q, wq.T, precision=_HIGHEST) + bq
    kp = jnp.dot(k, wk.T, precision=_HIGHEST) + bk
    z = qp[:, None, :] + kp[None, :, :]
    s = 1.0 / (1.0 + jnp.exp(-z))
    score = jnp.sum(s * w.reshape(1, 1, -1), axis=-1) + bw[0]
    att = jax.nn.softmax(score, axis=-1)
    out = jnp.dot(att, v, precision=_HIGHEST)
    return out, score


if __name__ == "__main__":
    # hidden=32 (module default); N1=16 exercises a 2-step "parallel" grid.
    N1, N2, d = 16, 24, 32

    key = jax.random.PRNGKey(0)
    keys = jax.random.split(key, 9)
    q = jax.random.normal(keys[0], (N1, d), dtype=jnp.float32)
    k = jax.random.normal(keys[1], (N2, d), dtype=jnp.float32)
    v = jax.random.normal(keys[2], (N2, d), dtype=jnp.float32)

    # Parameters in PyTorch nn.Linear layout: weight (out, in), bias (out,)
    scale = 1.0 / np.sqrt(d)
    wq = jax.random.uniform(keys[3], (d, d), jnp.float32, -scale, scale)
    bq = jax.random.uniform(keys[4], (d,), jnp.float32, -scale, scale)
    wk = jax.random.uniform(keys[5], (d, d), jnp.float32, -scale, scale)
    bk = jax.random.uniform(keys[6], (d,), jnp.float32, -scale, scale)
    w = jax.random.uniform(keys[7], (1, d), jnp.float32, -scale, scale)
    bw = jax.random.uniform(keys[8], (1,), jnp.float32, -scale, scale)

    out, score = vanilla_attention(q, k, v, wq, bq, wk, bk, w, bw)
    out = jax.block_until_ready(out)
    score = jax.block_until_ready(score)

    ref_out, ref_score = _reference(q, k, v, wq, bq, wk, bk, w, bw)
    np.testing.assert_allclose(np.asarray(score), np.asarray(ref_score),
                               rtol=1e-4, atol=1e-5)
    np.testing.assert_allclose(np.asarray(out), np.asarray(ref_out),
                               rtol=1e-4, atol=1e-5)

    print("KERNEL_OK")
</pallas_src>

<mosaic_0001>
module attributes {stable_mosaic.version = 11 : i64} {
  func.func @_vanilla_attention_kernel(%arg0: i32, %arg1: memref<8x32xf32, #tpu.memory_space<vmem>>, %arg2: memref<32x24xf32, #tpu.memory_space<vmem>>, %arg3: memref<24x32xf32, #tpu.memory_space<vmem>>, %arg4: memref<32x32xf32, #tpu.memory_space<vmem>>, %arg5: memref<1x32xf32, #tpu.memory_space<vmem>>, %arg6: memref<32xf32, #tpu.memory_space<smem>>, %arg7: memref<1xf32, #tpu.memory_space<smem>>, %arg8: memref<8x32xf32, #tpu.memory_space<vmem>>, %arg9: memref<8x24xf32, #tpu.memory_space<vmem>>) attributes {dimension_semantics = [#tpu.dimension_semantics<parallel>], iteration_bounds = array<i64: 2>, scalar_prefetch = 0 : i64, scratch_operands = 0 : i64, tpu.core_type = #tpu.core_type<tc>, window_params = [{transform_indices = @transform_0, window_bounds = array<i64: 8, 32>}, {pipeline_mode = #tpu.pipeline_mode<synchronous>, transform_indices = @transform_1, window_bounds = array<i64: 32, 24>}, {pipeline_mode = #tpu.pipeline_mode<synchronous>, transform_indices = @transform_2, window_bounds = array<i64: 24, 32>}, {pipeline_mode = #tpu.pipeline_mode<synchronous>, transform_indices = @transform_3, window_bounds = array<i64: 32, 32>}, {pipeline_mode = #tpu.pipeline_mode<synchronous>, transform_indices = @transform_4, window_bounds = array<i64: 1, 32>}, {transform_indices = @transform_5, window_bounds = array<i64: 32>}, {transform_indices = @transform_6, window_bounds = array<i64: 1>}, {transform_indices = @transform_7, window_bounds = array<i64: 8, 32>}, {transform_indices = @transform_8, window_bounds = array<i64: 8, 24>}]} {
    %c0 = arith.constant 0 : index
    %c0_0 = arith.constant 0 : index
    %0 = vector.load %arg1[%c0, %c0_0] : memref<8x32xf32, #tpu.memory_space<vmem>>, vector<8x32xf32>
    %c0_1 = arith.constant 0 : index
    %c0_2 = arith.constant 0 : index
    %1 = vector.load %arg4[%c0_1, %c0_2] : memref<32x32xf32, #tpu.memory_space<vmem>>, vector<32x32xf32>
    %cst = arith.constant dense<0.000000e+00> : vector<8x32xf32>
    %2 = tpu.matmul %0, %1, %cst {dimension_numbers = #tpu.dot_dimension_numbers<[1], [0], [0], [1], [0, 0, 1, 1], [], []>, precision = #tpu.contract_precision<fp32>} : vector<8x32xf32>, vector<32x32xf32>, vector<8x32xf32> -> vector<8x32xf32>
    %c0_3 = arith.constant 0 : index
    %c0_4 = arith.constant 0 : index
    %3 = vector.load %arg5[%c0_3, %c0_4] : memref<1x32xf32, #tpu.memory_space<vmem>>, vector<1x32xf32>
    %4 = vector.broadcast %3 : vector<1x32xf32> to vector<8x32xf32>
    %5 = arith.addf %2, %4 : vector<8x32xf32>
    %cst_5 = arith.constant 5.000000e-01 : f32
    %6 = vector.broadcast %cst_5 : f32 to vector<8x32xf32>
    %7 = arith.mulf %6, %5 : vector<8x32xf32>
    %c0_6 = arith.constant 0 : index
    %c0_7 = arith.constant 0 : index
    %8 = vector.load %arg2[%c0_6, %c0_7] : memref<32x24xf32, #tpu.memory_space<vmem>>, vector<32x24xf32>
    %cst_8 = arith.constant 0.000000e+00 : f32
    %9 = vector.broadcast %cst_8 : f32 to vector<8x24xf32>
    %10 = vector.extract_strided_slice %7 {offsets = [0, 0], sizes = [8, 1], strides = [1, 1]} : vector<8x32xf32> to vector<8x1xf32>
    %11 = vector.extract_strided_slice %8 {offsets = [0, 0], sizes = [1, 24], strides = [1, 1]} : vector<32x24xf32> to vector<1x24xf32>
    %12 = vector.broadcast %10 : vector<8x1xf32> to vector<8x24xf32>
    %13 = vector.broadcast %11 : vector<1x24xf32> to vector<8x24xf32>
    %14 = arith.addf %12, %13 : vector<8x24xf32>
    %c0_9 = arith.constant 0 : index
    %15 = memref.load %arg6[%c0_9] : memref<32xf32, #tpu.memory_space<smem>>
    %16 = math.tanh %14 : vector<8x24xf32>
    %17 = vector.broadcast %15 : f32 to vector<8x24xf32>
    %18 = arith.mulf %17, %16 : vector<8x24xf32>
    %19 = arith.addf %9, %18 : vector<8x24xf32>
    %20 = vector.extract_strided_slice %7 {offsets = [0, 1], sizes = [8, 1], strides = [1, 1]} : vector<8x32xf32> to vector<8x1xf32>
    %21 = vector.extract_strided_slice %8 {offsets = [1, 0], sizes = [1, 24], strides = [1, 1]} : vector<32x24xf32> to vector<1x24xf32>
    %22 = vector.broadcast %20 : vector<8x1xf32> to vector<8x24xf32>
    %23 = vector.broadcast %21 : vector<1x24xf32> to vector<8x24xf32>
    %24 = arith.addf %22, %23 : vector<8x24xf32>
    %c1 = arith.constant 1 : index
    %25 = memref.load %arg6[%c1] : memref<32xf32, #tpu.memory_space<smem>>
    %26 = math.tanh %24 : vector<8x24xf32>
    %27 = vector.broadcast %25 : f32 to vector<8x24xf32>
    %28 = arith.mulf %27, %26 : vector<8x24xf32>
    %29 = arith.addf %19, %28 : vector<8x24xf32>
    %30 = vector.extract_strided_slice %7 {offsets = [0, 2], sizes = [8, 1], strides = [1, 1]} : vector<8x32xf32> to vector<8x1xf32>
    %31 = vector.extract_strided_slice %8 {offsets = [2, 0], sizes = [1, 24], strides = [1, 1]} : vector<32x24xf32> to vector<1x24xf32>
    %32 = vector.broadcast %30 : vector<8x1xf32> to vector<8x24xf32>
    %33 = vector.broadcast %31 : vector<1x24xf32> to vector<8x24xf32>
    %34 = arith.addf %32, %33 : vector<8x24xf32>
    %c2 = arith.constant 2 : index
    %35 = memref.load %arg6[%c2] : memref<32xf32, #tpu.memory_space<smem>>
    %36 = math.tanh %34 : vector<8x24xf32>
    %37 = vector.broadcast %35 : f32 to vector<8x24xf32>
    %38 = arith.mulf %37, %36 : vector<8x24xf32>
    %39 = arith.addf %29, %38 : vector<8x24xf32>
    %40 = vector.extract_strided_slice %7 {offsets = [0, 3], sizes = [8, 1], strides = [1, 1]} : vector<8x32xf32> to vector<8x1xf32>
    %41 = vector.extract_strided_slice %8 {offsets = [3, 0], sizes = [1, 24], strides = [1, 1]} : vector<32x24xf32> to vector<1x24xf32>
    %42 = vector.broadcast %40 : vector<8x1xf32> to vector<8x24xf32>
    %43 = vector.broadcast %41 : vector<1x24xf32> to vector<8x24xf32>
    %44 = arith.addf %42, %43 : vector<8x24xf32>
    %c3 = arith.constant 3 : index
    %45 = memref.load %arg6[%c3] : memref<32xf32, #tpu.memory_space<smem>>
    %46 = math.tanh %44 : vector<8x24xf32>
    %47 = vector.broadcast %45 : f32 to vector<8x24xf32>
    %48 = arith.mulf %47, %46 : vector<8x24xf32>
    %49 = arith.addf %39, %48 : vector<8x24xf32>
    %50 = vector.extract_strided_slice %7 {offsets = [0, 4], sizes = [8, 1], strides = [1, 1]} : vector<8x32xf32> to vector<8x1xf32>
    %51 = vector.extract_strided_slice %8 {offsets = [4, 0], sizes = [1, 24], strides = [1, 1]} : vector<32x24xf32> to vector<1x24xf32>
    %52 = vector.broadcast %50 : vector<8x1xf32> to vector<8x24xf32>
    %53 = vector.broadcast %51 : vector<1x24xf32> to vector<8x24xf32>
    %54 = arith.addf %52, %53 : vector<8x24xf32>
    %c4 = arith.constant 4 : index
    %55 = memref.load %arg6[%c4] : memref<32xf32, #tpu.memory_space<smem>>
    %56 = math.tanh %54 : vector<8x24xf32>
    %57 = vector.broadcast %55 : f32 to vector<8x24xf32>
    %58 = arith.mulf %57, %56 : vector<8x24xf32>
    %59 = arith.addf %49, %58 : vector<8x24xf32>
    %60 = vector.extract_strided_slice %7 {offsets = [0, 5], sizes = [8, 1], strides = [1, 1]} : vector<8x32xf32> to vector<8x1xf32>
    %61 = vector.extract_strided_slice %8 {offsets = [5, 0], sizes = [1, 24], strides = [1, 1]} : vector<32x24xf32> to vector<1x24xf32>
    %62 = vector.broadcast %60 : vector<8x1xf32> to vector<8x24xf32>
    %63 = vector.broadcast %61 : vector<1x24xf32> to vector<8x24xf32>
    %64 = arith.addf %62, %63 : vector<8x24xf32>
    %c5 = arith.constant 5 : index
    %65 = memref.load %arg6[%c5] : memref<32xf32, #tpu.memory_space<smem>>
    %66 = math.tanh %64 : vector<8x24xf32>
    %67 = vector.broadcast %65 : f32 to vector<8x24xf32>
    %68 = arith.mulf %67, %66 : vector<8x24xf32>
    %69 = arith.addf %59, %68 : vector<8x24xf32>
    %70 = vector.extract_strided_slice %7 {offsets = [0, 6], sizes = [8, 1], strides = [1, 1]} : vector<8x32xf32> to vector<8x1xf32>
    %71 = vector.extract_strided_slice %8 {offsets = [6, 0], sizes = [1, 24], strides = [1, 1]} : vector<32x24xf32> to vector<1x24xf32>
    %72 = vector.broadcast %70 : vector<8x1xf32> to vector<8x24xf32>
    %73 = vector.broadcast %71 : vector<1x24xf32> to vector<8x24xf32>
    %74 = arith.addf %72, %73 : vector<8x24xf32>
    %c6 = arith.constant 6 : index
    %75 = memref.load %arg6[%c6] : memref<32xf32, #tpu.memory_space<smem>>
    %76 = math.tanh %74 : vector<8x24xf32>
    %77 = vector.broadcast %75 : f32 to vector<8x24xf32>
    %78 = arith.mulf %77, %76 : vector<8x24xf32>
    %79 = arith.addf %69, %78 : vector<8x24xf32>
    %80 = vector.extract_strided_slice %7 {offsets = [0, 7], sizes = [8, 1], strides = [1, 1]} : vector<8x32xf32> to vector<8x1xf32>
    %81 = vector.extract_strided_slice %8 {offsets = [7, 0], sizes = [1, 24], strides = [1, 1]} : vector<32x24xf32> to vector<1x24xf32>
    %82 = vector.broadcast %80 : vector<8x1xf32> to vector<8x24xf32>
    %83 = vector.broadcast %81 : vector<1x24xf32> to vector<8x24xf32>
    %84 = arith.addf %82, %83 : vector<8x24xf32>
    %c7 = arith.constant 7 : index
    %85 = memref.load %arg6[%c7] : memref<32xf32, #tpu.memory_space<smem>>
    %86 = math.tanh %84 : vector<8x24xf32>
    %87 = vector.broadcast %85 : f32 to vector<8x24xf32>
    %88 = arith.mulf %87, %86 : vector<8x24xf32>
    %89 = arith.addf %79, %88 : vector<8x24xf32>
    %90 = vector.extract_strided_slice %7 {offsets = [0, 8], sizes = [8, 1], strides = [1, 1]} : vector<8x32xf32> to vector<8x1xf32>
    %91 = vector.extract_strided_slice %8 {offsets = [8, 0], sizes = [1, 24], strides = [1, 1]} : vector<32x24xf32> to vector<1x24xf32>
    %92 = vector.broadcast %90 : vector<8x1xf32> to vector<8x24xf32>
    %93 = vector.broadcast %91 : vector<1x24xf32> to vector<8x24xf32>
    %94 = arith.addf %92, %93 : vector<8x24xf32>
    %c8 = arith.constant 8 : index
    %95 = memref.load %arg6[%c8] : memref<32xf32, #tpu.memory_space<smem>>
    %96 = math.tanh %94 : vector<8x24xf32>
    %97 = vector.broadcast %95 : f32 to vector<8x24xf32>
    %98 = arith.mulf %97, %96 : vector<8x24xf32>
    %99 = arith.addf %89, %98 : vector<8x24xf32>
    %100 = vector.extract_strided_slice %7 {offsets = [0, 9], sizes = [8, 1], strides = [1, 1]} : vector<8x32xf32> to vector<8x1xf32>
    %101 = vector.extract_strided_slice %8 {offsets = [9, 0], sizes = [1, 24], strides = [1, 1]} : vector<32x24xf32> to vector<1x24xf32>
    %102 = vector.broadcast %100 : vector<8x1xf32> to vector<8x24xf32>
    %103 = vector.broadcast %101 : vector<1x24xf32> to vector<8x24xf32>
    %104 = arith.addf %102, %103 : vector<8x24xf32>
    %c9 = arith.constant 9 : index
    %105 = memref.load %arg6[%c9] : memref<32xf32, #tpu.memory_space<smem>>
    %106 = math.tanh %104 : vector<8x24xf32>
    %107 = vector.broadcast %105 : f32 to vector<8x24xf32>
    %108 = arith.mulf %107, %106 : vector<8x24xf32>
    %109 = arith.addf %99, %108 : vector<8x24xf32>
    %110 = vector.extract_strided_slice %7 {offsets = [0, 10], sizes = [8, 1], strides = [1, 1]} : vector<8x32xf32> to vector<8x1xf32>
    %111 = vector.extract_strided_slice %8 {offsets = [10, 0], sizes = [1, 24], strides = [1, 1]} : vector<32x24xf32> to vector<1x24xf32>
    %112 = vector.broadcast %110 : vector<8x1xf32> to vector<8x24xf32>
    %113 = vector.broadcast %111 : vector<1x24xf32> to vector<8x24xf32>
    %114 = arith.addf %112, %113 : vector<8x24xf32>
    %c10 = arith.constant 10 : index
    %115 = memref.load %arg6[%c10] : memref<32xf32, #tpu.memory_space<smem>>
    %116 = math.tanh %114 : vector<8x24xf32>
    %117 = vector.broadcast %115 : f32 to vector<8x24xf32>
    %118 = arith.mulf %117, %116 : vector<8x24xf32>
    %119 = arith.addf %109, %118 : vector<8x24xf32>
    %120 = vector.extract_strided_slice %7 {offsets = [0, 11], sizes = [8, 1], strides = [1, 1]} : vector<8x32xf32> to vector<8x1xf32>
    %121 = vector.extract_strided_slice %8 {offsets = [11, 0], sizes = [1, 24], strides = [1, 1]} : vector<32x24xf32> to vector<1x24xf32>
    %122 = vector.broadcast %120 : vector<8x1xf32> to vector<8x24xf32>
    %123 = vector.broadcast %121 : vector<1x24xf32> to vector<8x24xf32>
    %124 = arith.addf %122, %123 : vector<8x24xf32>
    %c11 = arith.constant 11 : index
    %125 = memref.load %arg6[%c11] : memref<32xf32, #tpu.memory_space<smem>>
    %126 = math.tanh %124 : vector<8x24xf32>
    %127 = vector.broadcast %125 : f32 to vector<8x24xf32>
    %128 = arith.mulf %127, %126 : vector<8x24xf32>
    %129 = arith.addf %119, %128 : vector<8x24xf32>
    %130 = vector.extract_strided_slice %7 {offsets = [0, 12], sizes = [8, 1], strides = [1, 1]} : vector<8x32xf32> to vector<8x1xf32>
    %131 = vector.extract_strided_slice %8 {offsets = [12, 0], sizes = [1, 24], strides = [1, 1]} : vector<32x24xf32> to vector<1x24xf32>
    %132 = vector.broadcast %130 : vector<8x1xf32> to vector<8x24xf32>
    %133 = vector.broadcast %131 : vector<1x24xf32> to vector<8x24xf32>
    %134 = arith.addf %132, %133 : vector<8x24xf32>
    %c12 = arith.constant 12 : index
    %135 = memref.load %arg6[%c12] : memref<32xf32, #tpu.memory_space<smem>>
    %136 = math.tanh %134 : vector<8x24xf32>
    %137 = vector.broadcast %135 : f32 to vector<8x24xf32>
    %138 = arith.mulf %137, %136 : vector<8x24xf32>
    %139 = arith.addf %129, %138 : vector<8x24xf32>
    %140 = vector.extract_strided_slice %7 {offsets = [0, 13], sizes = [8, 1], strides = [1, 1]} : vector<8x32xf32> to vector<8x1xf32>
    %141 = vector.extract_strided_slice %8 {offsets = [13, 0], sizes = [1, 24], strides = [1, 1]} : vector<32x24xf32> to vector<1x24xf32>
    %142 = vector.broadcast %140 : vector<8x1xf32> to vector<8x24xf32>
    %143 = vector.broadcast %141 : vector<1x24xf32> to vector<8x24xf32>
    %144 = arith.addf %142, %143 : vector<8x24xf32>
    %c13 = arith.constant 13 : index
    %145 = memref.load %arg6[%c13] : memref<32xf32, #tpu.memory_space<smem>>
    %146 = math.tanh %144 : vector<8x24xf32>
    %147 = vector.broadcast %145 : f32 to vector<8x24xf32>
    %148 = arith.mulf %147, %146 : vector<8x24xf32>
    %149 = arith.addf %139, %148 : vector<8x24xf32>
    %150 = vector.extract_strided_slice %7 {offsets = [0, 14], sizes = [8, 1], strides = [1, 1]} : vector<8x32xf32> to vector<8x1xf32>
    %151 = vector.extract_strided_slice %8 {offsets = [14, 0], sizes = [1, 24], strides = [1, 1]} : vector<32x24xf32> to vector<1x24xf32>
    %152 = vector.broadcast %150 : vector<8x1xf32> to vector<8x24xf32>
    %153 = vector.broadcast %151 : vector<1x24xf32> to vector<8x24xf32>
    %154 = arith.addf %152, %153 : vector<8x24xf32>
    %c14 = arith.constant 14 : index
    %155 = memref.load %arg6[%c14] : memref<32xf32, #tpu.memory_space<smem>>
    %156 = math.tanh %154 : vector<8x24xf32>
    %157 = vector.broadcast %155 : f32 to vector<8x24xf32>
    %158 = arith.mulf %157, %156 : vector<8x24xf32>
    %159 = arith.addf %149, %158 : vector<8x24xf32>
    %160 = vector.extract_strided_slice %7 {offsets = [0, 15], sizes = [8, 1], strides = [1, 1]} : vector<8x32xf32> to vector<8x1xf32>
    %161 = vector.extract_strided_slice %8 {offsets = [15, 0], sizes = [1, 24], strides = [1, 1]} : vector<32x24xf32> to vector<1x24xf32>
    %162 = vector.broadcast %160 : vector<8x1xf32> to vector<8x24xf32>
    %163 = vector.broadcast %161 : vector<1x24xf32> to vector<8x24xf32>
    %164 = arith.addf %162, %163 : vector<8x24xf32>
    %c15 = arith.constant 15 : index
    %165 = memref.load %arg6[%c15] : memref<32xf32, #tpu.memory_space<smem>>
    %166 = math.tanh %164 : vector<8x24xf32>
    %167 = vector.broadcast %165 : f32 to vector<8x24xf32>
    %168 = arith.mulf %167, %166 : vector<8x24xf32>
    %169 = arith.addf %159, %168 : vector<8x24xf32>
    %170 = vector.extract_strided_slice %7 {offsets = [0, 16], sizes = [8, 1], strides = [1, 1]} : vector<8x32xf32> to vector<8x1xf32>
    %171 = vector.extract_strided_slice %8 {offsets = [16, 0], sizes = [1, 24], strides = [1, 1]} : vector<32x24xf32> to vector<1x24xf32>
    %172 = vector.broadcast %170 : vector<8x1xf32> to vector<8x24xf32>
    %173 = vector.broadcast %171 : vector<1x24xf32> to vector<8x24xf32>
    %174 = arith.addf %172, %173 : vector<8x24xf32>
    %c16 = arith.constant 16 : index
    %175 = memref.load %arg6[%c16] : memref<32xf32, #tpu.memory_space<smem>>
    %176 = math.tanh %174 : vector<8x24xf32>
    %177 = vector.broadcast %175 : f32 to vector<8x24xf32>
    %178 = arith.mulf %177, %176 : vector<8x24xf32>
    %179 = arith.addf %169, %178 : vector<8x24xf32>
    %180 = vector.extract_strided_slice %7 {offsets = [0, 17], sizes = [8, 1], strides = [1, 1]} : vector<8x32xf32> to vector<8x1xf32>
    %181 = vector.extract_strided_slice %8 {offsets = [17, 0], sizes = [1, 24], strides = [1, 1]} : vector<32x24xf32> to vector<1x24xf32>
    %182 = vector.broadcast %180 : vector<8x1xf32> to vector<8x24xf32>
    %183 = vector.broadcast %181 : vector<1x24xf32> to vector<8x24xf32>
    %184 = arith.addf %182, %183 : vector<8x24xf32>
    %c17 = arith.constant 17 : index
    %185 = memref.load %arg6[%c17] : memref<32xf32, #tpu.memory_space<smem>>
    %186 = math.tanh %184 : vector<8x24xf32>
    %187 = vector.broadcast %185 : f32 to vector<8x24xf32>
    %188 = arith.mulf %187, %186 : vector<8x24xf32>
    %189 = arith.addf %179, %188 : vector<8x24xf32>
    %190 = vector.extract_strided_slice %7 {offsets = [0, 18], sizes = [8, 1], strides = [1, 1]} : vector<8x32xf32> to vector<8x1xf32>
    %191 = vector.extract_strided_slice %8 {offsets = [18, 0], sizes = [1, 24], strides = [1, 1]} : vector<32x24xf32> to vector<1x24xf32>
    %192 = vector.broadcast %190 : vector<8x1xf32> to vector<8x24xf32>
    %193 = vector.broadcast %191 : vector<1x24xf32> to vector<8x24xf32>
    %194 = arith.addf %192, %193 : vector<8x24xf32>
    %c18 = arith.constant 18 : index
    %195 = memref.load %arg6[%c18] : memref<32xf32, #tpu.memory_space<smem>>
    %196 = math.tanh %194 : vector<8x24xf32>
    %197 = vector.broadcast %195 : f32 to vector<8x24xf32>
    %198 = arith.mulf %197, %196 : vector<8x24xf32>
    %199 = arith.addf %189, %198 : vector<8x24xf32>
    %200 = vector.extract_strided_slice %7 {offsets = [0, 19], sizes = [8, 1], strides = [1, 1]} : vector<8x32xf32> to vector<8x1xf32>
    %201 = vector.extract_strided_slice %8 {offsets = [19, 0], sizes = [1, 24], strides = [1, 1]} : vector<32x24xf32> to vector<1x24xf32>
    %202 = vector.broadcast %200 : vector<8x1xf32> to vector<8x24xf32>
    %203 = vector.broadcast %201 : vector<1x24xf32> to vector<8x24xf32>
    %204 = arith.addf %202, %203 : vector<8x24xf32>
    %c19 = arith.constant 19 : index
    %205 = memref.load %arg6[%c19] : memref<32xf32, #tpu.memory_space<smem>>
    %206 = math.tanh %204 : vector<8x24xf32>
    %207 = vector.broadcast %205 : f32 to vector<8x24xf32>
    %208 = arith.mulf %207, %206 : vector<8x24xf32>
    %209 = arith.addf %199, %208 : vector<8x24xf32>
    %210 = vector.extract_strided_slice %7 {offsets = [0, 20], sizes = [8, 1], strides = [1, 1]} : vector<8x32xf32> to vector<8x1xf32>
    %211 = vector.extract_strided_slice %8 {offsets = [20, 0], sizes = [1, 24], strides = [1, 1]} : vector<32x24xf32> to vector<1x24xf32>
    %212 = vector.broadcast %210 : vector<8x1xf32> to vector<8x24xf32>
    %213 = vector.broadcast %211 : vector<1x24xf32> to vector<8x24xf32>
    %214 = arith.addf %212, %213 : vector<8x24xf32>
    %c20 = arith.constant 20 : index
    %215 = memref.load %arg6[%c20] : memref<32xf32, #tpu.memory_space<smem>>
    %216 = math.tanh %214 : vector<8x24xf32>
    %217 = vector.broadcast %215 : f32 to vector<8x24xf32>
    %218 = arith.mulf %217, %216 : vector<8x24xf32>
    %219 = arith.addf %209, %218 : vector<8x24xf32>
    %220 = vector.extract_strided_slice %7 {offsets = [0, 21], sizes = [8, 1], strides = [1, 1]} : vector<8x32xf32> to vector<8x1xf32>
    %221 = vector.extract_strided_slice %8 {offsets = [21, 0], sizes = [1, 24], strides = [1, 1]} : vector<32x24xf32> to vector<1x24xf32>
    %222 = vector.broadcast %220 : vector<8x1xf32> to vector<8x24xf32>
    %223 = vector.broadcast %221 : vector<1x24xf32> to vector<8x24xf32>
    %224 = arith.addf %222, %223 : vector<8x24xf32>
    %c21 = arith.constant 21 : index
    %225 = memref.load %arg6[%c21] : memref<32xf32, #tpu.memory_space<smem>>
    %226 = math.tanh %224 : vector<8x24xf32>
    %227 = vector.broadcast %225 : f32 to vector<8x24xf32>
    %228 = arith.mulf %227, %226 : vector<8x24xf32>
    %229 = arith.addf %219, %228 : vector<8x24xf32>
    %230 = vector.extract_strided_slice %7 {offsets = [0, 22], sizes = [8, 1], strides = [1, 1]} : vector<8x32xf32> to vector<8x1xf32>
    %231 = vector.extract_strided_slice %8 {offsets = [22, 0], sizes = [1, 24], strides = [1, 1]} : vector<32x24xf32> to vector<1x24xf32>
    %232 = vector.broadcast %230 : vector<8x1xf32> to vector<8x24xf32>
    %233 = vector.broadcast %231 : vector<1x24xf32> to vector<8x24xf32>
    %234 = arith.addf %232, %233 : vector<8x24xf32>
    %c22 = arith.constant 22 : index
    %235 = memref.load %arg6[%c22] : memref<32xf32, #tpu.memory_space<smem>>
    %236 = math.tanh %234 : vector<8x24xf32>
    %237 = vector.broadcast %235 : f32 to vector<8x24xf32>
    %238 = arith.mulf %237, %236 : vector<8x24xf32>
    %239 = arith.addf %229, %238 : vector<8x24xf32>
    %240 = vector.extract_strided_slice %7 {offsets = [0, 23], sizes = [8, 1], strides = [1, 1]} : vector<8x32xf32> to vector<8x1xf32>
    %241 = vector.extract_strided_slice %8 {offsets = [23, 0], sizes = [1, 24], strides = [1, 1]} : vector<32x24xf32> to vector<1x24xf32>
    %242 = vector.broadcast %240 : vector<8x1xf32> to vector<8x24xf32>
    %243 = vector.broadcast %241 : vector<1x24xf32> to vector<8x24xf32>
    %244 = arith.addf %242, %243 : vector<8x24xf32>
    %c23 = arith.constant 23 : index
    %245 = memref.load %arg6[%c23] : memref<32xf32, #tpu.memory_space<smem>>
    %246 = math.tanh %244 : vector<8x24xf32>
    %247 = vector.broadcast %245 : f32 to vector<8x24xf32>
    %248 = arith.mulf %247, %246 : vector<8x24xf32>
    %249 = arith.addf %239, %248 : vector<8x24xf32>
    %250 = vector.extract_strided_slice %7 {offsets = [0, 24], sizes = [8, 1], strides = [1, 1]} : vector<8x32xf32> to vector<8x1xf32>
    %251 = vector.extract_strided_slice %8 {offsets = [24, 0], sizes = [1, 24], strides = [1, 1]} : vector<32x24xf32> to vector<1x24xf32>
    %252 = vector.broadcast %250 : vector<8x1xf32> to vector<8x24xf32>
    %253 = vector.broadcast %251 : vector<1x24xf32> to vector<8x24xf32>
    %254 = arith.addf %252, %253 : vector<8x24xf32>
    %c24 = arith.constant 24 : index
    %255 = memref.load %arg6[%c24] : memref<32xf32, #tpu.memory_space<smem>>
    %256 = math.tanh %254 : vector<8x24xf32>
    %257 = vector.broadcast %255 : f32 to vector<8x24xf32>
    %258 = arith.mulf %257, %256 : vector<8x24xf32>
    %259 = arith.addf %249, %258 : vector<8x24xf32>
    %260 = vector.extract_strided_slice %7 {offsets = [0, 25], sizes = [8, 1], strides = [1, 1]} : vector<8x32xf32> to vector<8x1xf32>
    %261 = vector.extract_strided_slice %8 {offsets = [25, 0], sizes = [1, 24], strides = [1, 1]} : vector<32x24xf32> to vector<1x24xf32>
    %262 = vector.broadcast %260 : vector<8x1xf32> to vector<8x24xf32>
    %263 = vector.broadcast %261 : vector<1x24xf32> to vector<8x24xf32>
    %264 = arith.addf %262, %263 : vector<8x24xf32>
    %c25 = arith.constant 25 : index
    %265 = memref.load %arg6[%c25] : memref<32xf32, #tpu.memory_space<smem>>
    %266 = math.tanh %264 : vector<8x24xf32>
    %267 = vector.broadcast %265 : f32 to vector<8x24xf32>
    %268 = arith.mulf %267, %266 : vector<8x24xf32>
    %269 = arith.addf %259, %268 : vector<8x24xf32>
    %270 = vector.extract_strided_slice %7 {offsets = [0, 26], sizes = [8, 1], strides = [1, 1]} : vector<8x32xf32> to vector<8x1xf32>
    %271 = vector.extract_strided_slice %8 {offsets = [26, 0], sizes = [1, 24], strides = [1, 1]} : vector<32x24xf32> to vector<1x24xf32>
    %272 = vector.broadcast %270 : vector<8x1xf32> to vector<8x24xf32>
    %273 = vector.broadcast %271 : vector<1x24xf32> to vector<8x24xf32>
    %274 = arith.addf %272, %273 : vector<8x24xf32>
    %c26 = arith.constant 26 : index
    %275 = memref.load %arg6[%c26] : memref<32xf32, #tpu.memory_space<smem>>
    %276 = math.tanh %274 : vector<8x24xf32>
    %277 = vector.broadcast %275 : f32 to vector<8x24xf32>
    %278 = arith.mulf %277, %276 : vector<8x24xf32>
    %279 = arith.addf %269, %278 : vector<8x24xf32>
    %280 = vector.extract_strided_slice %7 {offsets = [0, 27], sizes = [8, 1], strides = [1, 1]} : vector<8x32xf32> to vector<8x1xf32>
    %281 = vector.extract_strided_slice %8 {offsets = [27, 0], sizes = [1, 24], strides = [1, 1]} : vector<32x24xf32> to vector<1x24xf32>
    %282 = vector.broadcast %280 : vector<8x1xf32> to vector<8x24xf32>
    %283 = vector.broadcast %281 : vector<1x24xf32> to vector<8x24xf32>
    %284 = arith.addf %282, %283 : vector<8x24xf32>
    %c27 = arith.constant 27 : index
    %285 = memref.load %arg6[%c27] : memref<32xf32, #tpu.memory_space<smem>>
    %286 = math.tanh %284 : vector<8x24xf32>
    %287 = vector.broadcast %285 : f32 to vector<8x24xf32>
    %288 = arith.mulf %287, %286 : vector<8x24xf32>
    %289 = arith.addf %279, %288 : vector<8x24xf32>
    %290 = vector.extract_strided_slice %7 {offsets = [0, 28], sizes = [8, 1], strides = [1, 1]} : vector<8x32xf32> to vector<8x1xf32>
    %291 = vector.extract_strided_slice %8 {offsets = [28, 0], sizes = [1, 24], strides = [1, 1]} : vector<32x24xf32> to vector<1x24xf32>
    %292 = vector.broadcast %290 : vector<8x1xf32> to vector<8x24xf32>
    %293 = vector.broadcast %291 : vector<1x24xf32> to vector<8x24xf32>
    %294 = arith.addf %292, %293 : vector<8x24xf32>
    %c28 = arith.constant 28 : index
    %295 = memref.load %arg6[%c28] : memref<32xf32, #tpu.memory_space<smem>>
    %296 = math.tanh %294 : vector<8x24xf32>
    %297 = vector.broadcast %295 : f32 to vector<8x24xf32>
    %298 = arith.mulf %297, %296 : vector<8x24xf32>
    %299 = arith.addf %289, %298 : vector<8x24xf32>
    %300 = vector.extract_strided_slice %7 {offsets = [0, 29], sizes = [8, 1], strides = [1, 1]} : vector<8x32xf32> to vector<8x1xf32>
    %301 = vector.extract_strided_slice %8 {offsets = [29, 0], sizes = [1, 24], strides = [1, 1]} : vector<32x24xf32> to vector<1x24xf32>
    %302 = vector.broadcast %300 : vector<8x1xf32> to vector<8x24xf32>
    %303 = vector.broadcast %301 : vector<1x24xf32> to vector<8x24xf32>
    %304 = arith.addf %302, %303 : vector<8x24xf32>
    %c29 = arith.constant 29 : index
    %305 = memref.load %arg6[%c29] : memref<32xf32, #tpu.memory_space<smem>>
    %306 = math.tanh %304 : vector<8x24xf32>
    %307 = vector.broadcast %305 : f32 to vector<8x24xf32>
    %308 = arith.mulf %307, %306 : vector<8x24xf32>
    %309 = arith.addf %299, %308 : vector<8x24xf32>
    %310 = vector.extract_strided_slice %7 {offsets = [0, 30], sizes = [8, 1], strides = [1, 1]} : vector<8x32xf32> to vector<8x1xf32>
    %311 = vector.extract_strided_slice %8 {offsets = [30, 0], sizes = [1, 24], strides = [1, 1]} : vector<32x24xf32> to vector<1x24xf32>
    %312 = vector.broadcast %310 : vector<8x1xf32> to vector<8x24xf32>
    %313 = vector.broadcast %311 : vector<1x24xf32> to vector<8x24xf32>
    %314 = arith.addf %312, %313 : vector<8x24xf32>
    %c30 = arith.constant 30 : index
    %315 = memref.load %arg6[%c30] : memref<32xf32, #tpu.memory_space<smem>>
    %316 = math.tanh %314 : vector<8x24xf32>
    %317 = vector.broadcast %315 : f32 to vector<8x24xf32>
    %318 = arith.mulf %317, %316 : vector<8x24xf32>
    %319 = arith.addf %309, %318 : vector<8x24xf32>
    %320 = vector.extract_strided_slice %7 {offsets = [0, 31], sizes = [8, 1], strides = [1, 1]} : vector<8x32xf32> to vector<8x1xf32>
    %321 = vector.extract_strided_slice %8 {offsets = [31, 0], sizes = [1, 24], strides = [1, 1]} : vector<32x24xf32> to vector<1x24xf32>
    %322 = vector.broadcast %320 : vector<8x1xf32> to vector<8x24xf32>
    %323 = vector.broadcast %321 : vector<1x24xf32> to vector<8x24xf32>
    %324 = arith.addf %322, %323 : vector<8x24xf32>
    %c31 = arith.constant 31 : index
    %325 = memref.load %arg6[%c31] : memref<32xf32, #tpu.memory_space<smem>>
    %326 = math.tanh %324 : vector<8x24xf32>
    %327 = vector.broadcast %325 : f32 to vector<8x24xf32>
    %328 = arith.mulf %327, %326 : vector<8x24xf32>
    %329 = arith.addf %319, %328 : vector<8x24xf32>
    %cst_10 = arith.constant 5.000000e-01 : f32
    %330 = vector.broadcast %cst_10 : f32 to vector<8x24xf32>
    %331 = arith.mulf %330, %329 : vector<8x24xf32>
    %c0_11 = arith.constant 0 : index
    %332 = memref.load %arg7[%c0_11] : memref<1xf32, #tpu.memory_space<smem>>
    %333 = vector.broadcast %332 : f32 to vector<8x24xf32>
    %334 = arith.addf %331, %333 : vector<8x24xf32>
    %cst_12 = arith.constant dense<0xFF800000> : vector<8xf32>
    %335 = vector.multi_reduction <maximumf>, %334, %cst_12 [1] : vector<8x24xf32> to vector<8xf32>
    %336 = vector.shape_cast %335 : vector<8xf32> to vector<8x1xf32>
    %337 = vector.broadcast %336 : vector<8x1xf32> to vector<8x24xf32>
    %338 = arith.subf %334, %337 : vector<8x24xf32>
    %339 = math.exp %338 : vector<8x24xf32>
    %cst_13 = arith.constant dense<0.000000e+00> : vector<8xf32>
    %340 = vector.multi_reduction <add>, %339, %cst_13 [1] : vector<8x24xf32> to vector<8xf32>
    %341 = vector.shape_cast %340 : vector<8xf32> to vector<8x1xf32>
    %c0_14 = arith.constant 0 : index
    %c0_15 = arith.constant 0 : index
    %342 = vector.load %arg3[%c0_14, %c0_15] : memref<24x32xf32, #tpu.memory_space<vmem>>, vector<24x32xf32>
    %cst_16 = arith.constant dense<0.000000e+00> : vector<8x32xf32>
    %343 = tpu.matmul %339, %342, %cst_16 {dimension_numbers = #tpu.dot_dimension_numbers<[1], [0], [0], [1], [0, 0, 1, 1], [], []>, precision = #tpu.contract_precision<fp32>} : vector<8x24xf32>, vector<24x32xf32>, vector<8x32xf32> -> vector<8x32xf32>
    %344 = vector.broadcast %341 : vector<8x1xf32> to vector<8x32xf32>
    %345 = arith.divf %343, %344 : vector<8x32xf32>
    %c0_17 = arith.constant 0 : index
    %c0_18 = arith.constant 0 : index
    %346 = vector.load %arg8[%c0_17, %c0_18] : memref<8x32xf32, #tpu.memory_space<vmem>>, vector<8x32xf32>
    tpu.vector_store %arg8[%c0_17, %c0_18], %345 {strides = array<i32>} : memref<8x32xf32, #tpu.memory_space<vmem>>, vector<8x32xf32>,
    %c0_19 = arith.constant 0 : index
    %c0_20 = arith.constant 0 : index
    %347 = vector.load %arg9[%c0_19, %c0_20] : memref<8x24xf32, #tpu.memory_space<vmem>>, vector<8x24xf32>
    tpu.vector_store %arg9[%c0_19, %c0_20], %334 {strides = array<i32>} : memref<8x24xf32, #tpu.memory_space<vmem>>, vector<8x24xf32>,
    return
  }
  func.func @transform_0(%arg0: i32) -> (i32, i32) {
    %c0_i32 = arith.constant 0 : i32
    %c0_i32_0 = arith.constant 0 : i32
    return %arg0, %c0_i32 : i32, i32
  }
  func.func @transform_1(%arg0: i32) -> (i32, i32) {
    %c0_i32 = arith.constant 0 : i32
    %c0_i32_0 = arith.constant 0 : i32
    %c0_i32_1 = arith.constant 0 : i32
    return %c0_i32, %c0_i32_0 : i32, i32
  }
  func.func @transform_2(%arg0: i32) -> (i32, i32) {
    %c0_i32 = arith.constant 0 : i32
    %c0_i32_0 = arith.constant 0 : i32
    %c0_i32_1 = arith.constant 0 : i32
    return %c0_i32, %c0_i32_0 : i32, i32
  }
  func.func @transform_3(%arg0: i32) -> (i32, i32) {
    %c0_i32 = arith.constant 0 : i32
    %c0_i32_0 = arith.constant 0 : i32
    %c0_i32_1 = arith.constant 0 : i32
    return %c0_i32, %c0_i32_0 : i32, i32
  }
  func.func @transform_4(%arg0: i32) -> (i32, i32) {
    %c0_i32 = arith.constant 0 : i32
    %c0_i32_0 = arith.constant 0 : i32
    %c0_i32_1 = arith.constant 0 : i32
    return %c0_i32, %c0_i32_0 : i32, i32
  }
  func.func @transform_5(%arg0: i32) -> i32 {
    %c0_i32 = arith.constant 0 : i32
    %c0_i32_0 = arith.constant 0 : i32
    return %c0_i32 : i32
  }
  func.func @transform_6(%arg0: i32) -> i32 {
    %c0_i32 = arith.constant 0 : i32
    %c0_i32_0 = arith.constant 0 : i32
    return %c0_i32 : i32
  }
  func.func @transform_7(%arg0: i32) -> (i32, i32) {
    %c0_i32 = arith.constant 0 : i32
    %c0_i32_0 = arith.constant 0 : i32
    return %arg0, %c0_i32 : i32, i32
  }
  func.func @transform_8(%arg0: i32) -> (i32, i32) {
    %c0_i32 = arith.constant 0 : i32
    %c0_i32_0 = arith.constant 0 : i32
    return %arg0, %c0_i32 : i32, i32
  }
}

</mosaic_0001>

<llo_original>
// kernel: tpu_custom_call.1
$region0: #{tpu_custom_call.1}
  #allocation0 [shape = 'u32[]', space=smem, size = 0x4, offset = 0x4, fixed_abs, tag = 'smem constant byte address 0x4 - core index']
  #allocation1 [shape = 'u32[144,128]{1,0:T(1,128)}', space=vmem, size = 0x12000, scoped, tag = 'internal scratch']
  #allocation2 [shape = 'f32[1]{0:T(128)S(6)}', space=smem, size = 0x200, scoped, tag = 'scoped memory for tpu_custom_call.1']
  %s0 = inlined_call_operand.hbm [shape: f32[16,32], index: 0, kind: input, shape index: {}]
  %s1 = inlined_call_operand.vmem [shape: f32[32,24], index: 1, kind: input, shape index: {}]
  %s2 = inlined_call_operand.vmem [shape: f32[24,32], index: 2, kind: input, shape index: {}]
  %s3 = inlined_call_operand.vmem [shape: f32[32,32], index: 3, kind: input, shape index: {}]
  %s4 = inlined_call_operand.vmem [shape: f32[1,32], index: 4, kind: input, shape index: {}]
  %s5 = inlined_call_operand.vmem [shape: f32[32], index: 5, kind: input, shape index: {}]
  %s6 = inlined_call_operand.<no memory space> [shape: f32[1], index: 6, kind: input, shape index: {}]
  %s7 = inlined_call_operand.hbm [shape: f32[16,32], index: 7, kind: output, shape index: {0}]
  %s8 = inlined_call_operand.hbm [shape: f32[16,24], index: 8, kind: output, shape index: {1}]
  %9 = xla_tuple %s7, %s8
  %s10 = sld [smem:[#allocation0]]
  $region77: #{tpu_custom_call.1} parent=0
    _
  %s12 = ssub.s32 1, %s10
  %s13 = scalar_select 0, %s12, %s10
  %14 = sst [smem:[#allocation2]] %s6
  $region1: #{tpu_custom_call.1} parent=0
    #allocation3 [shape = 'u8[8192]{0}', space=vmem, size = 0x2000, scoped, tag = 'input window, operand 0']
    #allocation4 [shape = 's32[2]{0}', space=sflag, size = 0x8, scoped, tag = 'scoped memory for tpu_custom_call.1']
    #allocation5 [shape = 's32[2]{0}', space=sflag, size = 0x8, scoped, tag = 'scoped memory for tpu_custom_call.1']
    #allocation6 [shape = 's32[2]{0}', space=sflag, size = 0x8, scoped, tag = 'scoped memory for tpu_custom_call.1']
    #allocation7 [shape = 'u8[512]{0}', space=smem, size = 0x200, scoped, tag = 'input window, operand 5, single buffered']
    #allocation8 [shape = 'u8[8192]{0}', space=vmem, size = 0x2000, scoped, tag = 'output window, operand 0']
    #allocation9 [shape = 'u8[8192]{0}', space=vmem, size = 0x2000, scoped, tag = 'output window, operand 1']
    #allocation10 [shape = 's32[2]{0}', space=sflag, size = 0x8, scoped, tag = 'scoped memory for tpu_custom_call.1']
    %15 = vsyncpa [#allocation4], 0
    %s16 = scalar_lea.sflag [#allocation4], 1
    %17 = vsyncpa %s16, 0
    %18 = vsyncpa [#allocation6], 0
    %19 = vsyncpa [#allocation5], 0
    %s20 = scalar_lea.sflag [#allocation5], 1
    %21 = vsyncpa %s20, 0
    %22 = vsyncpa [#allocation10], 0
    %s23 = scalar_lea.sflag [#allocation10], 1
    %24 = vsyncpa %s23, 0
    loop: start=0, step=1, limit=4
    $region2: #{tpu_custom_call.1} parent=1 // loop_pre_header
      _
    $region3: #{tpu_custom_call.1} parent=1 // loop_header
      %s26 = sphi 0, %s30
      %p27 = scmp.ge.s32.totalorder %s26, 4
      %s36 = sphi 0, %s38
      %s39 = sphi 0, %s36
      %s40 = sphi 0, %s39
      %s56 = sphi 0, %s40
      %s60 = sphi 0, %s60
      %s62 = sphi 0, %s60
      %s63 = sphi 0, %s62
      %s77 = sphi 0, %s63
      %s81 = sphi 0, %s81
      %s83 = sphi 0, %s81
      %s84 = sphi 0, %s83
      %s98 = sphi 0, %s84
      %s102 = sphi 0, %s102
      %s104 = sphi 0, %s102
      %s105 = sphi 0, %s104
      %s119 = sphi 0, %s105
      %s123 = sphi 0, %s123
      %s125 = sphi 0, %s123
      %s126 = sphi 0, %s125
      %s140 = sphi 0, %s126
      %s144 = sphi 0, %s144
      %s146 = sphi 0, %s144
      %s147 = sphi 0, %s146
      %s161 = sphi 0, %s147
      %s165 = sphi 0, %s165
      %s167 = sphi 0, %s165
      %s168 = sphi 0, %s167
      %s182 = sphi 0, %s168
      %s188 = sphi 0, %s190
      %s191 = sphi 0, %s188
      %s192 = sphi 0, %s191
      %s208 = sphi 0, %s192
      %s214 = sphi 0, %s216
      %s217 = sphi 0, %s214
      %s218 = sphi 0, %s217
      %s234 = sphi 0, %s218
    $region4: #{tpu_custom_call.1} parent=1 // loop_header_branch
      %29 = sbr.rel (%p27) target = $region8
    $region5: #{tpu_custom_call.1} parent=1 // loop_body
      %s31 = ssub.s32 %s26, 1
      %s32 = ssub.s32 %s26, 2
      %s33 = sadd.s32 %s26, 1
      %s34 = ssub.s32 %s26, %s33
      %p35 = scmp.eq.s32.totalorder %s34, 0
      %s37 = sadd.s32 %s36, 1
      %s38 = scalar_select %p35, %s36, %s37
      %p41 = pneg %p35
      %p42 = scmp.eq.s32.totalorder %s26, 1
      %p43 = por %p41, %p42
      %p44 = scmp.ne.s32.totalorder %s36, %s39
      %p45 = scmp.eq.s32.totalorder %s26, 0
      %p46 = por %p44, %p45
      %p47 = scmp.ne.s32.totalorder %s36, %s39
      %p48 = scmp.eq.s32.totalorder %s31, 1
      %p49 = por %p47, %p48
      %p50 = scmp.ne.s32.totalorder %s39, %s40
      %p51 = scmp.eq.s32.totalorder %s31, 0
      %p52 = por %p50, %p51
      %p53 = scmp.ne.s32.totalorder %s39, %s40
      %p54 = scmp.eq.s32.totalorder %s32, 1
      %p55 = por %p53, %p54
      %p57 = scmp.ne.s32.totalorder %s40, %s56
      %p58 = scmp.eq.s32.totalorder %s32, 0
      %p59 = por %p57, %p58
      %s61 = sadd.s32 %s60, 1
      %p64 = scmp.eq.s32.totalorder %s26, 1
      %p65 = scmp.ne.s32.totalorder %s60, %s62
      %p66 = scmp.eq.s32.totalorder %s26, 0
      %p67 = por %p65, %p66
      %p68 = scmp.ne.s32.totalorder %s60, %s62
      %p69 = scmp.eq.s32.totalorder %s31, 1
      %p70 = por %p68, %p69
      %p71 = scmp.ne.s32.totalorder %s62, %s63
      %p72 = scmp.eq.s32.totalorder %s31, 0
      %p73 = por %p71, %p72
      %p74 = scmp.ne.s32.totalorder %s62, %s63
      %p75 = scmp.eq.s32.totalorder %s32, 1
      %p76 = por %p74, %p75
      %p78 = scmp.ne.s32.totalorder %s63, %s77
      %p79 = scmp.eq.s32.totalorder %s32, 0
      %p80 = por %p78, %p79
      %s82 = sadd.s32 %s81, 1
      %p85 = scmp.eq.s32.totalorder %s26, 1
      %p86 = scmp.ne.s32.totalorder %s81, %s83
      %p87 = scmp.eq.s32.totalorder %s26, 0
      %p88 = por %p86, %p87
      %p89 = scmp.ne.s32.totalorder %s81, %s83
      %p90 = scmp.eq.s32.totalorder %s31, 1
      %p91 = por %p89, %p90
      %p92 = scmp.ne.s32.totalorder %s83, %s84
      %p93 = scmp.eq.s32.totalorder %s31, 0
      %p94 = por %p92, %p93
      %p95 = scmp.ne.s32.totalorder %s83, %s84
      %p96 = scmp.eq.s32.totalorder %s32, 1
      %p97 = por %p95, %p96
      %p99 = scmp.ne.s32.totalorder %s84, %s98
      %p100 = scmp.eq.s32.totalorder %s32, 0
      %p101 = por %p99, %p100
      %s103 = sadd.s32 %s102, 1
      %p106 = scmp.eq.s32.totalorder %s26, 1
      %p107 = scmp.ne.s32.totalorder %s102, %s104
      %p108 = scmp.eq.s32.totalorder %s26, 0
      %p109 = por %p107, %p108
      %p110 = scmp.ne.s32.totalorder %s102, %s104
      %p111 = scmp.eq.s32.totalorder %s31, 1
      %p112 = por %p110, %p111
      %p113 = scmp.ne.s32.totalorder %s104, %s105
      %p114 = scmp.eq.s32.totalorder %s31, 0
      %p115 = por %p113, %p114
      %p116 = scmp.ne.s32.totalorder %s104, %s105
      %p117 = scmp.eq.s32.totalorder %s32, 1
      %p118 = por %p116, %p117
      %p120 = scmp.ne.s32.totalorder %s105, %s119
      %p121 = scmp.eq.s32.totalorder %s32, 0
      %p122 = por %p120, %p121
      %s124 = sadd.s32 %s123, 1
      %p127 = scmp.eq.s32.totalorder %s26, 1
      %p128 = scmp.ne.s32.totalorder %s123, %s125
      %p129 = scmp.eq.s32.totalorder %s26, 0
      %p130 = por %p128, %p129
      %p131 = scmp.ne.s32.totalorder %s123, %s125
      %p132 = scmp.eq.s32.totalorder %s31, 1
      %p133 = por %p131, %p132
      %p134 = scmp.ne.s32.totalorder %s125, %s126
      %p135 = scmp.eq.s32.totalorder %s31, 0
      %p136 = por %p134, %p135
      %p137 = scmp.ne.s32.totalorder %s125, %s126
      %p138 = scmp.eq.s32.totalorder %s32, 1
      %p139 = por %p137, %p138
      %p141 = scmp.ne.s32.totalorder %s126, %s140
      %p142 = scmp.eq.s32.totalorder %s32, 0
      %p143 = por %p141, %p142
      %s145 = sadd.s32 %s144, 1
      %p148 = scmp.eq.s32.totalorder %s26, 1
      %p149 = scmp.ne.s32.totalorder %s144, %s146
      %p150 = scmp.eq.s32.totalorder %s26, 0
      %p151 = por %p149, %p150
      %p152 = scmp.ne.s32.totalorder %s144, %s146
      %p153 = scmp.eq.s32.totalorder %s31, 1
      %p154 = por %p152, %p153
      %p155 = scmp.ne.s32.totalorder %s146, %s147
      %p156 = scmp.eq.s32.totalorder %s31, 0
      %p157 = por %p155, %p156
      %p158 = scmp.ne.s32.totalorder %s146, %s147
      %p159 = scmp.eq.s32.totalorder %s32, 1
      %p160 = por %p158, %p159
      %p162 = scmp.ne.s32.totalorder %s147, %s161
      %p163 = scmp.eq.s32.totalorder %s32, 0
      %p164 = por %p162, %p163
      %s166 = sadd.s32 %s165, 1
      %p169 = scmp.eq.s32.totalorder %s26, 1
      %p170 = scmp.ne.s32.totalorder %s165, %s167
      %p171 = scmp.eq.s32.totalorder %s26, 0
      %p172 = por %p170, %p171
      %p173 = scmp.ne.s32.totalorder %s165, %s167
      %p174 = scmp.eq.s32.totalorder %s31, 1
      %p175 = por %p173, %p174
      %p176 = scmp.ne.s32.totalorder %s167, %s168
      %p177 = scmp.eq.s32.totalorder %s31, 0
      %p178 = por %p176, %p177
      %p179 = scmp.ne.s32.totalorder %s167, %s168
      %p180 = scmp.eq.s32.totalorder %s32, 1
      %p181 = por %p179, %p180
      %p183 = scmp.ne.s32.totalorder %s168, %s182
      %p184 = scmp.eq.s32.totalorder %s32, 0
      %p185 = por %p183, %p184
      %s186 = ssub.s32 %s26, %s33
      %p187 = scmp.eq.s32.totalorder %s186, 0
      %s189 = sadd.s32 %s188, 1
      %s190 = scalar_select %p187, %s188, %s189
      %p193 = pneg %p187
      %p194 = scmp.eq.s32.totalorder %s26, 1
      %p195 = por %p193, %p194
      %p196 = scmp.ne.s32.totalorder %s188, %s191
      %p197 = scmp.eq.s32.totalorder %s26, 0
      %p198 = por %p196, %p197
      %p199 = scmp.ne.s32.totalorder %s188, %s191
      %p200 = scmp.eq.s32.totalorder %s31, 1
      %p201 = por %p199, %p200
      %p202 = scmp.ne.s32.totalorder %s191, %s192
      %p203 = scmp.eq.s32.totalorder %s31, 0
      %p204 = por %p202, %p203
      %p205 = scmp.ne.s32.totalorder %s191, %s192
      %p206 = scmp.eq.s32.totalorder %s32, 1
      %p207 = por %p205, %p206
      %p209 = scmp.ne.s32.totalorder %s192, %s208
      %p210 = scmp.eq.s32.totalorder %s32, 0
      %p211 = por %p209, %p210
      %s212 = ssub.s32 %s26, %s33
      %p213 = scmp.eq.s32.totalorder %s212, 0
      %s215 = sadd.s32 %s214, 1
      %s216 = scalar_select %p213, %s214, %s215
      %p219 = pneg %p213
      %p220 = scmp.eq.s32.totalorder %s26, 1
      %p221 = por %p219, %p220
      %p222 = scmp.ne.s32.totalorder %s214, %s217
      %p223 = scmp.eq.s32.totalorder %s26, 0
      %p224 = por %p222, %p223
      %p225 = scmp.ne.s32.totalorder %s214, %s217
      %p226 = scmp.eq.s32.totalorder %s31, 1
      %p227 = por %p225, %p226
      %p228 = scmp.ne.s32.totalorder %s217, %s218
      %p229 = scmp.eq.s32.totalorder %s31, 0
      %p230 = por %p228, %p229
      %p231 = scmp.ne.s32.totalorder %s217, %s218
      %p232 = scmp.eq.s32.totalorder %s32, 1
      %p233 = por %p231, %p232
      %p235 = scmp.ne.s32.totalorder %s218, %s234
      %p236 = scmp.eq.s32.totalorder %s32, 0
      %p237 = por %p235, %p236
      %p238 = scmp.le.s32.totalorder 1, %s26
      %p239 = scmp.lt.s32.totalorder %s26, 3
      %p240 = pnand %p238, %p239
      %p241 = pneg %p240
      // Predicated region
      $region9: #{tpu_custom_call.1} parent=5 // pred_check
        _
      $region10: #{tpu_custom_call.1} parent=5 // pred_check_branch
        %243 = sbr.rel (%p240) target = $region12
      $region11: #{tpu_custom_call.1} parent=5 // pred_region
        %s244 = ssub.s32 %s26, 1
        // Predicated region
        $region13: #{tpu_custom_call.1} parent=11 // pred_check
          %p245 = pneg %p73
        $region14: #{tpu_custom_call.1} parent=11 // pred_check_branch
          %247 = sbr.rel (%p245) target = $region16
        $region15: #{tpu_custom_call.1} parent=11 // pred_region
          _
        $region16: #{tpu_custom_call.1} parent=11 // pred_fallthru
          _
        // Predicated region
        $region17: #{tpu_custom_call.1} parent=11 // pred_check
          %p248 = pneg %p94
        $region18: #{tpu_custom_call.1} parent=11 // pred_check_branch
          %250 = sbr.rel (%p248) target = $region20
        $region19: #{tpu_custom_call.1} parent=11 // pred_region
          _
        $region20: #{tpu_custom_call.1} parent=11 // pred_fallthru
          _
        // Predicated region
        $region21: #{tpu_custom_call.1} parent=11 // pred_check
          %p251 = pneg %p115
        $region22: #{tpu_custom_call.1} parent=11 // pred_check_branch
          %253 = sbr.rel (%p251) target = $region24
        $region23: #{tpu_custom_call.1} parent=11 // pred_region
          _
        $region24: #{tpu_custom_call.1} parent=11 // pred_fallthru
          _
        // Predicated region
        $region25: #{tpu_custom_call.1} parent=11 // pred_check
          %p254 = pneg %p136
        $region26: #{tpu_custom_call.1} parent=11 // pred_check_branch
          %256 = sbr.rel (%p254) target = $region28
        $region27: #{tpu_custom_call.1} parent=11 // pred_region
          _
        $region28: #{tpu_custom_call.1} parent=11 // pred_fallthru
          _
        // Predicated region
        $region29: #{tpu_custom_call.1} parent=11 // pred_check
          %p257 = pneg %p157
        $region30: #{tpu_custom_call.1} parent=11 // pred_check_branch
          %259 = sbr.rel (%p257) target = $region32
        $region31: #{tpu_custom_call.1} parent=11 // pred_region
          %s261 = ssub.s32 16, 16
          %262 = vsyncadd [#allocation6], %s261
          %s264 = sshll.u32 %s5, 4
          %s265 = int_to_ptr.vmem [resolvable:$true] %s264
          %267 = dma.vmem_to_smem %s265, 16, [#allocation7], [#allocation6]
        $region32: #{tpu_custom_call.1} parent=11 // pred_fallthru
          _
        // Predicated region
        $region33: #{tpu_custom_call.1} parent=11 // pred_check
          %p268 = pneg %p178
        $region34: #{tpu_custom_call.1} parent=11 // pred_check_branch
          %270 = sbr.rel (%p268) target = $region36
        $region35: #{tpu_custom_call.1} parent=11 // pred_region
          _
        $region36: #{tpu_custom_call.1} parent=11 // pred_fallthru
          _
      $region12: #{tpu_custom_call.1} parent=5 // pred_fallthru
        _
      %p271 = scmp.lt.s32.totalorder %s26, 2
      // Predicated region
      $region37: #{tpu_custom_call.1} parent=5 // pred_check
        %p272 = pneg %p271
      $region38: #{tpu_custom_call.1} parent=5 // pred_check_branch
        %274 = sbr.rel (%p272) target = $region40
      $region39: #{tpu_custom_call.1} parent=5 // pred_region
        // Predicated region
        $region41: #{tpu_custom_call.1} parent=39 // pred_check
          %p275 = pneg %p46
        $region42: #{tpu_custom_call.1} parent=39 // pred_check_branch
          %277 = sbr.rel (%p275) target = $region44
        $region43: #{tpu_custom_call.1} parent=39 // pred_region
          %s278 = sand.u32 %s36, 1
          %s279 = scalar_lea.sflag [#allocation4], %s278
          %s280 = sand.u32 %s36, 1
          %s281 = smul.addr %s280, 8
          %s282 = scalar_lea.vmem [#allocation3], %s281
          %s284 = ssub.s32 128, 128
          %285 = vsyncadd %s279, %s284
          %s286 = smul.addr %s26, 128
          %s287 = scalar_lea.hbm %s0, %s286
          %s289 = sshll.u32 %s282, 4
          %s290 = int_to_ptr.vmem [resolvable:$true] %s289
          %292 = dma.hbm_to_vmem [thread:$0]  %s287, 128, %s290, %s279
        $region44: #{tpu_custom_call.1} parent=39 // pred_fallthru
          _
      $region40: #{tpu_custom_call.1} parent=5 // pred_fallthru
        _
      %p293 = scmp.le.s32.totalorder 1, %s26
      %p294 = scmp.lt.s32.totalorder %s26, 3
      %p295 = pnand %p293, %p294
      %p296 = pneg %p295
      // Predicated region
      $region45: #{tpu_custom_call.1} parent=5 // pred_check
        _
      $region46: #{tpu_custom_call.1} parent=5 // pred_check_branch
        %298 = sbr.rel (%p295) target = $region48
      $region47: #{tpu_custom_call.1} parent=5 // pred_region
        %s299 = ssub.s32 %s26, 1
        %s300 = sand.u32 %s39, 1
        %s301 = scalar_lea.sflag [#allocation4], %s300
        %s302 = sand.u32 %s39, 1
        %s303 = smul.addr %s302, 8
        %s304 = scalar_lea.vmem [#allocation3], %s303
        // Predicated region
        $region49: #{tpu_custom_call.1} parent=47 // pred_check
          %p305 = pneg %p52
        $region50: #{tpu_custom_call.1} parent=47 // pred_check_branch
          %307 = sbr.rel (%p305) target = $region52
        $region51: #{tpu_custom_call.1} parent=47 // pred_region
          %308 = dma.done %s301, 128
        $region52: #{tpu_custom_call.1} parent=47 // pred_fallthru
          _
        // Predicated region
        $region53: #{tpu_custom_call.1} parent=47 // pred_check
          %p309 = pneg %p157
        $region54: #{tpu_custom_call.1} parent=47 // pred_check_branch
          %311 = sbr.rel (%p309) target = $region56
        $region55: #{tpu_custom_call.1} parent=47 // pred_region
          %312 = dma.done [#allocation6], 16
        $region56: #{tpu_custom_call.1} parent=47 // pred_fallthru
          _
        %313 = sfence
        %s314 = sand.u32 %s39, 1
        %s315 = scalar_lea.sflag [#allocation4], %s314
        %s316 = sand.u32 %s39, 1
        %s317 = smul.addr %s316, 8
        %s318 = scalar_lea.vmem [#allocation3], %s317
        %p319 = pneg %p52
        %p320 = pneg %p49
        %p321 = pneg %p73
        %p322 = pneg %p70
        %p323 = pneg %p94
        %p324 = pneg %p91
        %p325 = pneg %p115
        %p326 = pneg %p112
        %p327 = pneg %p136
        %p328 = pneg %p133
        %p329 = pneg %p157
        %p330 = pneg %p154
        %p331 = pneg %p178
        %p332 = pneg %p175
        %p333 = pneg %p204
        %p334 = pneg %p201
        %s335 = sand.u32 %s191, 1
        %s336 = scalar_lea.sflag [#allocation5], %s335
        %s337 = sand.u32 %s191, 1
        %s338 = smul.addr %s337, 8
        %s339 = scalar_lea.vmem [#allocation8], %s338
        %p340 = pneg %p230
        %p341 = pneg %p227
        %s342 = sand.u32 %s217, 1
        %s343 = scalar_lea.sflag [#allocation10], %s342
        %s344 = sand.u32 %s217, 1
        %s345 = smul.addr %s344, 8
        %s346 = scalar_lea.vmem [#allocation9], %s345
        %v347 = vld [vmem:[%s304] sm:$0xff]
        %v348 = vld [vmem:[%s3] sm:$0xff]
        %v349 = vld [vmem:[%s3 + $0x8] sm:$0xff]
        %v350 = vld [vmem:[%s3 + $0x10] sm:$0xff]
        %v351 = vld [vmem:[%s3 + $0x18] sm:$0xff]
        %v352 = vld [vmem:[%s4] sm:$0x1]
        %v354 = vlaneseq
        %v355 = vshrl.u32 %v354, 7
        %v356 = vsub.s32 0, %v355
        %v357 = vrot.slane %v352, %v356
        %vm359 = vcmask 261120
        %v361 = vsel %vm359, %v347, 0
        %363 = vmatprep.subr.mxu0 0.0
        %v364 = vand.u32 %v348, 4294901760
        %365 = vmatpush1.msra.mxu0 %v364
        %366 = vmatprep.subr.mxu0 0.0
        %v367 = vand.u32 %v349, 4294901760
        %368 = vmatpush1.msra.mxu0 %v367
        %369 = vmatprep.subr.mxu0 0.0
        %v370 = vand.u32 %v350, 4294901760
        %371 = vmatpush1.msra.mxu0 %v370
        %372 = vmatprep.subr.mxu0 0.0
        %v373 = vand.u32 %v351, 4294901760
        %374 = vmatpush1.msra.mxu0 %v373
        %375 = vmatprep.subr.mxu0 0.0
        %376 = vmatpush1.msra.mxu0 0.0
        %377 = vmatprep.subr.mxu0 0.0
        %378 = vmatpush1.msra.mxu0 0.0
        %379 = vmatprep.subr.mxu0 0.0
        %380 = vmatpush1.msra.mxu0 0.0
        %381 = vmatprep.subr.mxu0 0.0
        %382 = vmatpush1.msra.mxu0 0.0
        %383 = vmatprep.subr.mxu0 0.0
        %384 = vmatpush1.msra.mxu0 0.0
        %385 = vmatprep.subr.mxu0 0.0
        %386 = vmatpush1.msra.mxu0 0.0
        %387 = vmatprep.subr.mxu0 0.0
        %388 = vmatpush1.msra.mxu0 0.0
        %389 = vmatprep.subr.mxu0 0.0
        %390 = vmatpush1.msra.mxu0 0.0
        %391 = vmatprep.subr.mxu0 0.0
        %392 = vmatpush1.msra.mxu0 0.0
        %393 = vmatprep.subr.mxu0 0.0
        %394 = vmatpush1.msra.mxu0 0.0
        %395 = vmatprep.subr.mxu0 0.0
        %396 = vmatpush1.msra.mxu0 0.0
        %397 = vmatprep.subr.mxu0 0.0
        %398 = vmatpush1.msra.mxu0 0.0
        %399 = vmatprep.subr.mxu0 0.0
        %400 = vmatpush1.msra.mxu0 0.0
        %401 = vmatprep.subr.mxu0 0.0
        %402 = vmatpush1.msra.mxu0 0.0
        %403 = vmatprep.subr.mxu0 0.0
        %404 = vmatpush1.msra.mxu0 0.0
        %405 = vmatprep.subr.mxu0 0.0
        %406 = vmatpush1.msra.mxu0 0.0
        %407 = vmatprep.subr.mxu0 0.0
        %408 = vmatpush1.msra.mxu0 0.0
        %409 = vmatprep.subr.mxu0 0.0
        %410 = vmatpush1.msra.mxu0 0.0
        %411 = vmatprep.subr.mxu0 0.0
        %412 = vmatpush1.msra.mxu0 0.0
        %413 = vmatprep.subr.mxu0 0.0
        %414 = vmatpush1.msra.mxu0 0.0
        %415 = vmatprep.subr.mxu0 0.0
        %416 = vmatpush1.msra.mxu0 0.0
        %417 = vmatprep.subr.mxu0 0.0
        %418 = vmatpush1.msra.mxu0 0.0
        %419 = vmatprep.subr.mxu0 0.0
        %420 = vmatpush1.msra.mxu0 0.0
        %421 = vmatprep.subr.mxu0 0.0
        %422 = vmatpush1.msra.mxu0 0.0
        %423 = vmatprep.subr.mxu0 0.0
        %424 = vmatpush1.msra.mxu0 0.0
        %425 = vmatprep.subr.mxu0 0.0
        %426 = vmatpush1.msra.mxu0 0.0
        %427 = vmatprep.subr.mxu0 0.0
        %428 = vmatpush1.msra.mxu0 0.0
        %429 = vmatprep.subr.mxu0 0.0
        %430 = vmatpush1.msra.mxu0 0.0
        %431 = vmatprep.mubr.f32.mxu0 0.0
        %v432 = vand.u32 %v361, 4294901760
        %v433 = vsub.f32 %v361, %v432
        %v434 = vand.u32 %v433, 4294901760
        %v435 = vsub.f32 %v433, %v434
        %v436 = vand.u32 %v435, 4294901760
        %437 = vmatmul.mubr.f32.gmra.mrb[0].mxu0 %v436
        %v438 = vpop.f32.mrb[0].mxu0
        %v439 = vadd.f32 %v357, %v438
        %v440 = vpop.f32.mrb[0].mxu0
        %441 = vdwg.mxu0
        %442 = vmatprep.subr.mxu0 0.0
        %v443 = vand.u32 %v348, 4294901760
        %v444 = vsub.f32 %v348, %v443
        %v445 = vand.u32 %v444, 4294901760
        %v446 = vsub.f32 %v444, %v445
        %v447 = vand.u32 %v446, 4294901760
        %448 = vmatpush1.msra.mxu0 %v447
        %449 = vmatprep.subr.mxu0 0.0
        %v450 = vand.u32 %v349, 4294901760
        %v451 = vsub.f32 %v349, %v450
        %v452 = vand.u32 %v451, 4294901760
        %v453 = vsub.f32 %v451, %v452
        %v454 = vand.u32 %v453, 4294901760
        %455 = vmatpush1.msra.mxu0 %v454
        %456 = vmatprep.subr.mxu0 0.0
        %v457 = vand.u32 %v350, 4294901760
        %v458 = vsub.f32 %v350, %v457
        %v459 = vand.u32 %v458, 4294901760
        %v460 = vsub.f32 %v458, %v459
        %v461 = vand.u32 %v460, 4294901760
        %462 = vmatpush1.msra.mxu0 %v461
        %463 = vmatprep.subr.mxu0 0.0
        %v464 = vand.u32 %v351, 4294901760
        %v465 = vsub.f32 %v351, %v464
        %v466 = vand.u32 %v465, 4294901760
        %v467 = vsub.f32 %v465, %v466
        %v468 = vand.u32 %v467, 4294901760
        %469 = vmatpush1.msra.mxu0 %v468
        %470 = vmatprep.subr.mxu0 0.0
        %471 = vmatpush1.msra.mxu0 0.0
        %472 = vmatprep.subr.mxu0 0.0
        %473 = vmatpush1.msra.mxu0 0.0
        %474 = vmatprep.subr.mxu0 0.0
        %475 = vmatpush1.msra.mxu0 0.0
        %476 = vmatprep.subr.mxu0 0.0
        %477 = vmatpush1.msra.mxu0 0.0
        %478 = vmatprep.subr.mxu0 0.0
        %479 = vmatpush1.msra.mxu0 0.0
        %480 = vmatprep.subr.mxu0 0.0
        %481 = vmatpush1.msra.mxu0 0.0
        %482 = vmatprep.subr.mxu0 0.0
        %483 = vmatpush1.msra.mxu0 0.0
        %484 = vmatprep.subr.mxu0 0.0
        %485 = vmatpush1.msra.mxu0 0.0
        %486 = vmatprep.subr.mxu0 0.0
        %487 = vmatpush1.msra.mxu0 0.0
        %488 = vmatprep.subr.mxu0 0.0
        %489 = vmatpush1.msra.mxu0 0.0
        %490 = vmatprep.subr.mxu0 0.0
        %491 = vmatpush1.msra.mxu0 0.0
        %492 = vmatprep.subr.mxu0 0.0
        %493 = vmatpush1.msra.mxu0 0.0
        %494 = vmatprep.subr.mxu0 0.0
        %495 = vmatpush1.msra.mxu0 0.0
        %496 = vmatprep.subr.mxu0 0.0
        %497 = vmatpush1.msra.mxu0 0.0
        %498 = vmatprep.subr.mxu0 0.0
        %499 = vmatpush1.msra.mxu0 0.0
        %500 = vmatprep.subr.mxu0 0.0
        %501 = vmatpush1.msra.mxu0 0.0
        %502 = vmatprep.subr.mxu0 0.0
        %503 = vmatpush1.msra.mxu0 0.0
        %504 = vmatprep.subr.mxu0 0.0
        %505 = vmatpush1.msra.mxu0 0.0
        %506 = vmatprep.subr.mxu0 0.0
        %507 = vmatpush1.msra.mxu0 0.0
        %508 = vmatprep.subr.mxu0 0.0
        %509 = vmatpush1.msra.mxu0 0.0
        %510 = vmatprep.subr.mxu0 0.0
        %511 = vmatpush1.msra.mxu0 0.0
        %512 = vmatprep.subr.mxu0 0.0
        %513 = vmatpush1.msra.mxu0 0.0
        %514 = vmatprep.subr.mxu0 0.0
        %515 = vmatpush1.msra.mxu0 0.0
        %516 = vmatprep.subr.mxu0 0.0
        %517 = vmatpush1.msra.mxu0 0.0
        %518 = vmatprep.subr.mxu0 0.0
        %519 = vmatpush1.msra.mxu0 0.0
        %520 = vmatprep.subr.mxu0 0.0
        %521 = vmatpush1.msra.mxu0 0.0
        %522 = vmatprep.subr.mxu0 0.0
        %523 = vmatpush1.msra.mxu0 0.0
        %524 = vmatprep.subr.mxu0 0.0
        %525 = vmatpush1.msra.mxu0 0.0
        %526 = vmatprep.mubr.f32.mxu0 0.0
        %v527 = vand.u32 %v361, 4294901760
        %528 = vmatmul.mubr.f32.gmra.mrb[0].mxu0 %v527
        %v529 = vpop.f32.mrb[0].mxu0
        %v530 = vadd.f32 %v439, %v529
        %v531 = vpop.f32.mrb[0].mxu0
        %532 = vdwg.mxu0
        %533 = vmatprep.subr.mxu0 0.0
        %v534 = vand.u32 %v348, 4294901760
        %v535 = vsub.f32 %v348, %v534
        %536 = vmatpush1.msra.mxu0 %v535
        %537 = vmatprep.subr.mxu0 0.0
        %v538 = vand.u32 %v349, 4294901760
        %v539 = vsub.f32 %v349, %v538
        %540 = vmatpush1.msra.mxu0 %v539
        %541 = vmatprep.subr.mxu0 0.0
        %v542 = vand.u32 %v350, 4294901760
        %v543 = vsub.f32 %v350, %v542
        %544 = vmatpush1.msra.mxu0 %v543
        %545 = vmatprep.subr.mxu0 0.0
        %v546 = vand.u32 %v351, 4294901760
        %v547 = vsub.f32 %v351, %v546
        %548 = vmatpush1.msra.mxu0 %v547
        %549 = vmatprep.subr.mxu0 0.0
        %550 = vmatpush1.msra.mxu0 0.0
        %551 = vmatprep.subr.mxu0 0.0
        %552 = vmatpush1.msra.mxu0 0.0
        %553 = vmatprep.subr.mxu0 0.0
        %554 = vmatpush1.msra.mxu0 0.0
        %555 = vmatprep.subr.mxu0 0.0
        %556 = vmatpush1.msra.mxu0 0.0
        %557 = vmatprep.subr.mxu0 0.0
        %558 = vmatpush1.msra.mxu0 0.0
        %559 = vmatprep.subr.mxu0 0.0
        %560 = vmatpush1.msra.mxu0 0.0
        %561 = vmatprep.subr.mxu0 0.0
        %562 = vmatpush1.msra.mxu0 0.0
        %563 = vmatprep.subr.mxu0 0.0
        %564 = vmatpush1.msra.mxu0 0.0
        %565 = vmatprep.subr.mxu0 0.0
        %566 = vmatpush1.msra.mxu0 0.0
        %567 = vmatprep.subr.mxu0 0.0
        %568 = vmatpush1.msra.mxu0 0.0
        %569 = vmatprep.subr.mxu0 0.0
        %570 = vmatpush1.msra.mxu0 0.0
        %571 = vmatprep.subr.mxu0 0.0
        %572 = vmatpush1.msra.mxu0 0.0
        %573 = vmatprep.subr.mxu0 0.0
        %574 = vmatpush1.msra.mxu0 0.0
        %575 = vmatprep.subr.mxu0 0.0
        %576 = vmatpush1.msra.mxu0 0.0
        %577 = vmatprep.subr.mxu0 0.0
        %578 = vmatpush1.msra.mxu0 0.0
        %579 = vmatprep.subr.mxu0 0.0
        %580 = vmatpush1.msra.mxu0 0.0
        %581 = vmatprep.subr.mxu0 0.0
        %582 = vmatpush1.msra.mxu0 0.0
        %583 = vmatprep.subr.mxu0 0.0
        %584 = vmatpush1.msra.mxu0 0.0
        %585 = vmatprep.subr.mxu0 0.0
        %586 = vmatpush1.msra.mxu0 0.0
        %587 = vmatprep.subr.mxu0 0.0
        %588 = vmatpush1.msra.mxu0 0.0
        %589 = vmatprep.subr.mxu0 0.0
        %590 = vmatpush1.msra.mxu0 0.0
        %591 = vmatprep.subr.mxu0 0.0
        %592 = vmatpush1.msra.mxu0 0.0
        %593 = vmatprep.subr.mxu0 0.0
        %594 = vmatpush1.msra.mxu0 0.0
        %595 = vmatprep.subr.mxu0 0.0
        %596 = vmatpush1.msra.mxu0 0.0
        %597 = vmatprep.subr.mxu0 0.0
        %598 = vmatpush1.msra.mxu0 0.0
        %599 = vmatprep.subr.mxu0 0.0
        %600 = vmatpush1.msra.mxu0 0.0
        %601 = vmatprep.subr.mxu0 0.0
        %602 = vmatpush1.msra.mxu0 0.0
        %603 = vmatprep.subr.mxu0 0.0
        %604 = vmatpush1.msra.mxu0 0.0
        %605 = vmatprep.mubr.f32.mxu0 0.0
        %v606 = vand.u32 %v361, 4294901760
        %v607 = vsub.f32 %v361, %v606
        %608 = vmatmul.mubr.f32.gmra.mrb[0].mxu0 %v607
        %v609 = vpop.f32.mrb[0].mxu0
        %v610 = vadd.f32 %v530, %v609
        %v611 = vpop.f32.mrb[0].mxu0
        %612 = vdwg.mxu0
        %613 = vmatprep.subr.mxu0 0.0
        %v614 = vand.u32 %v348, 4294901760
        %615 = vmatpush1.msra.mxu0 %v614
        %616 = vmatprep.subr.mxu0 0.0
        %v617 = vand.u32 %v349, 4294901760
        %618 = vmatpush1.msra.mxu0 %v617
        %619 = vmatprep.subr.mxu0 0.0
        %v620 = vand.u32 %v350, 4294901760
        %621 = vmatpush1.msra.mxu0 %v620
        %622 = vmatprep.subr.mxu0 0.0
        %v623 = vand.u32 %v351, 4294901760
        %624 = vmatpush1.msra.mxu0 %v623
        %625 = vmatprep.subr.mxu0 0.0
        %626 = vmatpush1.msra.mxu0 0.0
        %627 = vmatprep.subr.mxu0 0.0
        %628 = vmatpush1.msra.mxu0 0.0
        %629 = vmatprep.subr.mxu0 0.0
        %630 = vmatpush1.msra.mxu0 0.0
        %631 = vmatprep.subr.mxu0 0.0
        %632 = vmatpush1.msra.mxu0 0.0
        %633 = vmatprep.subr.mxu0 0.0
        %634 = vmatpush1.msra.mxu0 0.0
        %635 = vmatprep.subr.mxu0 0.0
        %636 = vmatpush1.msra.mxu0 0.0
        %637 = vmatprep.subr.mxu0 0.0
        %638 = vmatpush1.msra.mxu0 0.0
        %639 = vmatprep.subr.mxu0 0.0
        %640 = vmatpush1.msra.mxu0 0.0
        %641 = vmatprep.subr.mxu0 0.0
        %642 = vmatpush1.msra.mxu0 0.0
        %643 = vmatprep.subr.mxu0 0.0
        %644 = vmatpush1.msra.mxu0 0.0
        %645 = vmatprep.subr.mxu0 0.0
        %646 = vmatpush1.msra.mxu0 0.0
        %647 = vmatprep.subr.mxu0 0.0
        %648 = vmatpush1.msra.mxu0 0.0
        %649 = vmatprep.subr.mxu0 0.0
        %650 = vmatpush1.msra.mxu0 0.0
        %651 = vmatprep.subr.mxu0 0.0
        %652 = vmatpush1.msra.mxu0 0.0
        %653 = vmatprep.subr.mxu0 0.0
        %654 = vmatpush1.msra.mxu0 0.0
        %655 = vmatprep.subr.mxu0 0.0
        %656 = vmatpush1.msra.mxu0 0.0
        %657 = vmatprep.subr.mxu0 0.0
        %658 = vmatpush1.msra.mxu0 0.0
        %659 = vmatprep.subr.mxu0 0.0
        %660 = vmatpush1.msra.mxu0 0.0
        %661 = vmatprep.subr.mxu0 0.0
        %662 = vmatpush1.msra.mxu0 0.0
        %663 = vmatprep.subr.mxu0 0.0
        %664 = vmatpush1.msra.mxu0 0.0
        %665 = vmatprep.subr.mxu0 0.0
        %666 = vmatpush1.msra.mxu0 0.0
        %667 = vmatprep.subr.mxu0 0.0
        %668 = vmatpush1.msra.mxu0 0.0
        %669 = vmatprep.subr.mxu0 0.0
        %670 = vmatpush1.msra.mxu0 0.0
        %671 = vmatprep.subr.mxu0 0.0
        %672 = vmatpush1.msra.mxu0 0.0
        %673 = vmatprep.subr.mxu0 0.0
        %674 = vmatpush1.msra.mxu0 0.0
        %675 = vmatprep.subr.mxu0 0.0
        %676 = vmatpush1.msra.mxu0 0.0
        %677 = vmatprep.subr.mxu0 0.0
        %678 = vmatpush1.msra.mxu0 0.0
        %679 = vmatprep.subr.mxu0 0.0
        %680 = vmatpush1.msra.mxu0 0.0
        %681 = vmatprep.mubr.f32.mxu0 0.0
        %v682 = vand.u32 %v361, 4294901760
        %v683 = vsub.f32 %v361, %v682
        %v684 = vand.u32 %v683, 4294901760
        %685 = vmatmul.mubr.f32.gmra.mrb[0].mxu0 %v684
        %v686 = vpop.f32.mrb[0].mxu0
        %v687 = vadd.f32 %v610, %v686
        %v688 = vpop.f32.mrb[0].mxu0
        %689 = vdwg.mxu0
        %690 = vmatprep.subr.mxu0 0.0
        %v691 = vand.u32 %v348, 4294901760
        %v692 = vsub.f32 %v348, %v691
        %v693 = vand.u32 %v692, 4294901760
        %694 = vmatpush1.msra.mxu0 %v693
        %695 = vmatprep.subr.mxu0 0.0
        %v696 = vand.u32 %v349, 4294901760
        %v697 = vsub.f32 %v349, %v696
        %v698 = vand.u32 %v697, 4294901760
        %699 = vmatpush1.msra.mxu0 %v698
        %700 = vmatprep.subr.mxu0 0.0
        %v701 = vand.u32 %v350, 4294901760
        %v702 = vsub.f32 %v350, %v701
        %v703 = vand.u32 %v702, 4294901760
        %704 = vmatpush1.msra.mxu0 %v703
        %705 = vmatprep.subr.mxu0 0.0
        %v706 = vand.u32 %v351, 4294901760
        %v707 = vsub.f32 %v351, %v706
        %v708 = vand.u32 %v707, 4294901760
        %709 = vmatpush1.msra.mxu0 %v708
        %710 = vmatprep.subr.mxu0 0.0
        %711 = vmatpush1.msra.mxu0 0.0
        %712 = vmatprep.subr.mxu0 0.0
        %713 = vmatpush1.msra.mxu0 0.0
        %714 = vmatprep.subr.mxu0 0.0
        %715 = vmatpush1.msra.mxu0 0.0
        %716 = vmatprep.subr.mxu0 0.0
        %717 = vmatpush1.msra.mxu0 0.0
        %718 = vmatprep.subr.mxu0 0.0
        %719 = vmatpush1.msra.mxu0 0.0
        %720 = vmatprep.subr.mxu0 0.0
        %721 = vmatpush1.msra.mxu0 0.0
        %722 = vmatprep.subr.mxu0 0.0
        %723 = vmatpush1.msra.mxu0 0.0
        %724 = vmatprep.subr.mxu0 0.0
        %725 = vmatpush1.msra.mxu0 0.0
        %726 = vmatprep.subr.mxu0 0.0
        %727 = vmatpush1.msra.mxu0 0.0
        %728 = vmatprep.subr.mxu0 0.0
        %729 = vmatpush1.msra.mxu0 0.0
        %730 = vmatprep.subr.mxu0 0.0
        %731 = vmatpush1.msra.mxu0 0.0
        %732 = vmatprep.subr.mxu0 0.0
        %733 = vmatpush1.msra.mxu0 0.0
        %734 = vmatprep.subr.mxu0 0.0
        %735 = vmatpush1.msra.mxu0 0.0
        %736 = vmatprep.subr.mxu0 0.0
        %737 = vmatpush1.msra.mxu0 0.0
        %738 = vmatprep.subr.mxu0 0.0
        %739 = vmatpush1.msra.mxu0 0.0
        %740 = vmatprep.subr.mxu0 0.0
        %741 = vmatpush1.msra.mxu0 0.0
        %742 = vmatprep.subr.mxu0 0.0
        %743 = vmatpush1.msra.mxu0 0.0
        %744 = vmatprep.subr.mxu0 0.0
        %745 = vmatpush1.msra.mxu0 0.0
        %746 = vmatprep.subr.mxu0 0.0
        %747 = vmatpush1.msra.mxu0 0.0
        %748 = vmatprep.subr.mxu0 0.0
        %749 = vmatpush1.msra.mxu0 0.0
        %750 = vmatprep.subr.mxu0 0.0
        %751 = vmatpush1.msra.mxu0 0.0
        %752 = vmatprep.subr.mxu0 0.0
        %753 = vmatpush1.msra.mxu0 0.0
        %754 = vmatprep.subr.mxu0 0.0
        %755 = vmatpush1.msra.mxu0 0.0
        %756 = vmatprep.subr.mxu0 0.0
        %757 = vmatpush1.msra.mxu0 0.0
        %758 = vmatprep.subr.mxu0 0.0
        %759 = vmatpush1.msra.mxu0 0.0
        %760 = vmatprep.subr.mxu0 0.0
        %761 = vmatpush1.msra.mxu0 0.0
        %762 = vmatprep.subr.mxu0 0.0
        %763 = vmatpush1.msra.mxu0 0.0
        %764 = vmatprep.subr.mxu0 0.0
        %765 = vmatpush1.msra.mxu0 0.0
        %766 = vmatprep.mubr.f32.mxu0 0.0
        %v767 = vand.u32 %v361, 4294901760
        %768 = vmatmul.mubr.f32.gmra.mrb[0].mxu0 %v767
        %v769 = vpop.f32.mrb[0].mxu0
        %v770 = vadd.f32 %v687, %v769
        %v771 = vpop.f32.mrb[0].mxu0
        %772 = vdwg.mxu0
        %773 = vmatprep.subr.mxu0 0.0
        %v774 = vand.u32 %v348, 4294901760
        %775 = vmatpush1.msra.mxu0 %v774
        %776 = vmatprep.subr.mxu0 0.0
        %v777 = vand.u32 %v349, 4294901760
        %778 = vmatpush1.msra.mxu0 %v777
        %779 = vmatprep.subr.mxu0 0.0
        %v780 = vand.u32 %v350, 4294901760
        %781 = vmatpush1.msra.mxu0 %v780
        %782 = vmatprep.subr.mxu0 0.0
        %v783 = vand.u32 %v351, 4294901760
        %784 = vmatpush1.msra.mxu0 %v783
        %785 = vmatprep.subr.mxu0 0.0
        %786 = vmatpush1.msra.mxu0 0.0
        %787 = vmatprep.subr.mxu0 0.0
        %788 = vmatpush1.msra.mxu0 0.0
        %789 = vmatprep.subr.mxu0 0.0
        %790 = vmatpush1.msra.mxu0 0.0
        %791 = vmatprep.subr.mxu0 0.0
        %792 = vmatpush1.msra.mxu0 0.0
        %793 = vmatprep.subr.mxu0 0.0
        %794 = vmatpush1.msra.mxu0 0.0
        %795 = vmatprep.subr.mxu0 0.0
        %796 = vmatpush1.msra.mxu0 0.0
        %797 = vmatprep.subr.mxu0 0.0
        %798 = vmatpush1.msra.mxu0 0.0
        %799 = vmatprep.subr.mxu0 0.0
        %800 = vmatpush1.msra.mxu0 0.0
        %801 = vmatprep.subr.mxu0 0.0
        %802 = vmatpush1.msra.mxu0 0.0
        %803 = vmatprep.subr.mxu0 0.0
        %804 = vmatpush1.msra.mxu0 0.0
        %805 = vmatprep.subr.mxu0 0.0
        %806 = vmatpush1.msra.mxu0 0.0
        %807 = vmatprep.subr.mxu0 0.0
        %808 = vmatpush1.msra.mxu0 0.0
        %809 = vmatprep.subr.mxu0 0.0
        %810 = vmatpush1.msra.mxu0 0.0
        %811 = vmatprep.subr.mxu0 0.0
        %812 = vmatpush1.msra.mxu0 0.0
        %813 = vmatprep.subr.mxu0 0.0
        %814 = vmatpush1.msra.mxu0 0.0
        %815 = vmatprep.subr.mxu0 0.0
        %816 = vmatpush1.msra.mxu0 0.0
        %817 = vmatprep.subr.mxu0 0.0
        %818 = vmatpush1.msra.mxu0 0.0
        %819 = vmatprep.subr.mxu0 0.0
        %820 = vmatpush1.msra.mxu0 0.0
        %821 = vmatprep.subr.mxu0 0.0
        %822 = vmatpush1.msra.mxu0 0.0
        %823 = vmatprep.subr.mxu0 0.0
        %824 = vmatpush1.msra.mxu0 0.0
        %825 = vmatprep.subr.mxu0 0.0
        %826 = vmatpush1.msra.mxu0 0.0
        %827 = vmatprep.subr.mxu0 0.0
        %828 = vmatpush1.msra.mxu0 0.0
        %829 = vmatprep.subr.mxu0 0.0
        %830 = vmatpush1.msra.mxu0 0.0
        %831 = vmatprep.subr.mxu0 0.0
        %832 = vmatpush1.msra.mxu0 0.0
        %833 = vmatprep.subr.mxu0 0.0
        %834 = vmatpush1.msra.mxu0 0.0
        %835 = vmatprep.subr.mxu0 0.0
        %836 = vmatpush1.msra.mxu0 0.0
        %837 = vmatprep.subr.mxu0 0.0
        %838 = vmatpush1.msra.mxu0 0.0
        %839 = vmatprep.subr.mxu0 0.0
        %840 = vmatpush1.msra.mxu0 0.0
        %841 = vmatprep.mubr.f32.mxu0 0.0
        %v842 = vand.u32 %v361, 4294901760
        %843 = vmatmul.mubr.f32.gmra.mrb[0].mxu0 %v842
        %v844 = vpop.f32.mrb[0].mxu0
        %v845 = vadd.f32 %v770, %v844
        %v846 = vpop.f32.mrb[0].mxu0
        %847 = vdwg.mxu0
        %v848 = vmul.f32 %v845, 0.5
        %v849 = vld [vmem:[%s1] sm:$0xff]
        %v850 = vld [vmem:[%s1 + $0x8] sm:$0xff]
        %v851 = vld [vmem:[%s1 + $0x10] sm:$0xff]
        %v852 = vld [vmem:[%s1 + $0x18] sm:$0xff]
        %854 = vset.pattern.permute.xlu0 0
        %855 = vperm.xlu0 %854, %v848
        %v856 = vpop.permute.xlu0 %855
        %v858 = vlaneseq
        %v859 = vshrl.u32 %v858, 7
        %v860 = vsub.s32 0, %v859
        %v861 = vrot.slane %v849, %v860
        %v862 = vadd.f32 %v856, %v861
        %s863 = sld [smem:[#allocation7]]
        %v864 = vtanh.pop %v862
        %v865 = vstv %s863
        %v866 = vmul.f32 %v865, %v864
        %v867 = vadd.f32 %v866, 0.0
        %868 = vset.pattern.permute.xlu0 1
        %869 = vperm.xlu0 %868, %v848
        %v870 = vpop.permute.xlu0 %869
        %v872 = vlaneseq
        %v873 = vshrl.u32 %v872, 7
        %v874 = vsub.s32 1, %v873
        %v875 = vrot.slane %v849, %v874
        %v876 = vadd.f32 %v870, %v875
        %s877 = sld [smem:[#allocation7 + $0x1]]
        %v878 = vtanh.pop %v876
        %v879 = vstv %s877
        %v880 = vmul.f32 %v879, %v878
        %v881 = vadd.f32 %v867, %v880
        %882 = vset.pattern.permute.xlu0 2
        %883 = vperm.xlu0 %882, %v848
        %v884 = vpop.permute.xlu0 %883
        %v886 = vlaneseq
        %v887 = vshrl.u32 %v886, 7
        %v888 = vsub.s32 2, %v887
        %v889 = vrot.slane %v849, %v888
        %v890 = vadd.f32 %v884, %v889
        %s891 = sld [smem:[#allocation7 + $0x2]]
        %v892 = vtanh.pop %v890
        %v893 = vstv %s891
        %v894 = vmul.f32 %v893, %v892
        %v895 = vadd.f32 %v881, %v894
        %896 = vset.pattern.permute.xlu0 3
        %897 = vperm.xlu0 %896, %v848
        %v898 = vpop.permute.xlu0 %897
        %v900 = vlaneseq
        %v901 = vshrl.u32 %v900, 7
        %v902 = vsub.s32 3, %v901
        %v903 = vrot.slane %v849, %v902
        %v904 = vadd.f32 %v898, %v903
        %s905 = sld [smem:[#allocation7 + $0x3]]
        %v906 = vtanh.pop %v904
        %v907 = vstv %s905
        %v908 = vmul.f32 %v907, %v906
        %v909 = vadd.f32 %v895, %v908
        %910 = vset.pattern.permute.xlu0 4
        %911 = vperm.xlu0 %910, %v848
        %v912 = vpop.permute.xlu0 %911
        %v914 = vlaneseq
        %v915 = vshrl.u32 %v914, 7
        %v916 = vsub.s32 4, %v915
        %v917 = vrot.slane %v849, %v916
        %v918 = vadd.f32 %v912, %v917
        %s919 = sld [smem:[#allocation7 + $0x4]]
        %v920 = vtanh.pop %v918
        %v921 = vstv %s919
        %v922 = vmul.f32 %v921, %v920
        %v923 = vadd.f32 %v909, %v922
        %924 = vset.pattern.permute.xlu0 5
        %925 = vperm.xlu0 %924, %v848
        %v926 = vpop.permute.xlu0 %925
        %v928 = vlaneseq
        %v929 = vshrl.u32 %v928, 7
        %v930 = vsub.s32 5, %v929
        %v931 = vrot.slane %v849, %v930
        %v932 = vadd.f32 %v926, %v931
        %s933 = sld [smem:[#allocation7 + $0x5]]
        %v934 = vtanh.pop %v932
        %v935 = vstv %s933
        %v936 = vmul.f32 %v935, %v934
        %v937 = vadd.f32 %v923, %v936
        %938 = vset.pattern.permute.xlu0 6
        %939 = vperm.xlu0 %938, %v848
        %v940 = vpop.permute.xlu0 %939
        %v942 = vlaneseq
        %v943 = vshrl.u32 %v942, 7
        %v944 = vsub.s32 6, %v943
        %v945 = vrot.slane %v849, %v944
        %v946 = vadd.f32 %v940, %v945
        %s947 = sld [smem:[#allocation7 + $0x6]]
        %v948 = vtanh.pop %v946
        %v949 = vstv %s947
        %v950 = vmul.f32 %v949, %v948
        %v951 = vadd.f32 %v937, %v950
        %952 = vset.pattern.permute.xlu0 7
        %953 = vperm.xlu0 %952, %v848
        %v954 = vpop.permute.xlu0 %953
        %v956 = vlaneseq
        %v957 = vshrl.u32 %v956, 7
        %v958 = vsub.s32 7, %v957
        %v959 = vrot.slane %v849, %v958
        %v960 = vadd.f32 %v954, %v959
        %s961 = sld [smem:[#allocation7 + $0x7]]
        %v962 = vtanh.pop %v960
        %v963 = vstv %s961
        %v964 = vmul.f32 %v963, %v962
        %v965 = vadd.f32 %v951, %v964
        %966 = vset.pattern.permute.xlu0 8
        %967 = vperm.xlu0 %966, %v848
        %v968 = vpop.permute.xlu0 %967
        %v970 = vlaneseq
        %v971 = vshrl.u32 %v970, 7
        %v972 = vsub.s32 0, %v971
        %v973 = vrot.slane %v850, %v972
        %v974 = vadd.f32 %v968, %v973
        %s975 = sld [smem:[#allocation7 + $0x8]]
        %v976 = vtanh.pop %v974
        %v977 = vstv %s975
        %v978 = vmul.f32 %v977, %v976
        %v979 = vadd.f32 %v965, %v978
        %980 = vset.pattern.permute.xlu0 9
        %981 = vperm.xlu0 %980, %v848
        %v982 = vpop.permute.xlu0 %981
        %v984 = vlaneseq
        %v985 = vshrl.u32 %v984, 7
        %v986 = vsub.s32 1, %v985
        %v987 = vrot.slane %v850, %v986
        %v988 = vadd.f32 %v982, %v987
        %s989 = sld [smem:[#allocation7 + $0x9]]
        %v990 = vtanh.pop %v988
        %v991 = vstv %s989
        %v992 = vmul.f32 %v991, %v990
        %v993 = vadd.f32 %v979, %v992
        %994 = vset.pattern.permute.xlu0 10
        %995 = vperm.xlu0 %994, %v848
        %v996 = vpop.permute.xlu0 %995
        %v998 = vlaneseq
        %v999 = vshrl.u32 %v998, 7
        %v1000 = vsub.s32 2, %v999
        %v1001 = vrot.slane %v850, %v1000
        %v1002 = vadd.f32 %v996, %v1001
        %s1003 = sld [smem:[#allocation7 + $0xa]]
        %v1004 = vtanh.pop %v1002
        %v1005 = vstv %s1003
        %v1006 = vmul.f32 %v1005, %v1004
        %v1007 = vadd.f32 %v993, %v1006
        %1008 = vset.pattern.permute.xlu0 11
        %1009 = vperm.xlu0 %1008, %v848
        %v1010 = vpop.permute.xlu0 %1009
        %v1012 = vlaneseq
        %v1013 = vshrl.u32 %v1012, 7
        %v1014 = vsub.s32 3, %v1013
        %v1015 = vrot.slane %v850, %v1014
        %v1016 = vadd.f32 %v1010, %v1015
        %s1017 = sld [smem:[#allocation7 + $0xb]]
        %v1018 = vtanh.pop %v1016
        %v1019 = vstv %s1017
        %v1020 = vmul.f32 %v1019, %v1018
        %v1021 = vadd.f32 %v1007, %v1020
        %1022 = vset.pattern.permute.xlu0 12
        %1023 = vperm.xlu0 %1022, %v848
        %v1024 = vpop.permute.xlu0 %1023
        %v1026 = vlaneseq
        %v1027 = vshrl.u32 %v1026, 7
        %v1028 = vsub.s32 4, %v1027
        %v1029 = vrot.slane %v850, %v1028
        %v1030 = vadd.f32 %v1024, %v1029
        %s1031 = sld [smem:[#allocation7 + $0xc]]
        %v1032 = vtanh.pop %v1030
        %v1033 = vstv %s1031
        %v1034 = vmul.f32 %v1033, %v1032
        %v1035 = vadd.f32 %v1021, %v1034
        %1036 = vset.pattern.permute.xlu0 13
        %1037 = vperm.xlu0 %1036, %v848
        %v1038 = vpop.permute.xlu0 %1037
        %v1040 = vlaneseq
        %v1041 = vshrl.u32 %v1040, 7
        %v1042 = vsub.s32 5, %v1041
        %v1043 = vrot.slane %v850, %v1042
        %v1044 = vadd.f32 %v1038, %v1043
        %s1045 = sld [smem:[#allocation7 + $0xd]]
        %v1046 = vtanh.pop %v1044
        %v1047 = vstv %s1045
        %v1048 = vmul.f32 %v1047, %v1046
        %v1049 = vadd.f32 %v1035, %v1048
        %1050 = vset.pattern.permute.xlu0 14
        %1051 = vperm.xlu0 %1050, %v848
        %v1052 = vpop.permute.xlu0 %1051
        %v1054 = vlaneseq
        %v1055 = vshrl.u32 %v1054, 7
        %v1056 = vsub.s32 6, %v1055
        %v1057 = vrot.slane %v850, %v1056
        %v1058 = vadd.f32 %v1052, %v1057
        %s1059 = sld [smem:[#allocation7 + $0xe]]
        %v1060 = vtanh.pop %v1058
        %v1061 = vstv %s1059
        %v1062 = vmul.f32 %v1061, %v1060
        %v1063 = vadd.f32 %v1049, %v1062
        %1064 = vset.pattern.permute.xlu0 15
        %1065 = vperm.xlu0 %1064, %v848
        %v1066 = vpop.permute.xlu0 %1065
        %v1068 = vlaneseq
        %v1069 = vshrl.u32 %v1068, 7
        %v1070 = vsub.s32 7, %v1069
        %v1071 = vrot.slane %v850, %v1070
        %v1072 = vadd.f32 %v1066, %v1071
        %s1073 = sld [smem:[#allocation7 + $0xf]]
        %v1074 = vtanh.pop %v1072
        %v1075 = vstv %s1073
        %v1076 = vmul.f32 %v1075, %v1074
        %v1077 = vadd.f32 %v1063, %v1076
        %1078 = vset.pattern.permute.xlu0 16
        %1079 = vperm.xlu0 %1078, %v848
        %v1080 = vpop.permute.xlu0 %1079
        %v1082 = vlaneseq
        %v1083 = vshrl.u32 %v1082, 7
        %v1084 = vsub.s32 0, %v1083
        %v1085 = vrot.slane %v851, %v1084
        %v1086 = vadd.f32 %v1080, %v1085
        %s1087 = sld [smem:[#allocation7 + $0x10]]
        %v1088 = vtanh.pop %v1086
        %v1089 = vstv %s1087
        %v1090 = vmul.f32 %v1089, %v1088
        %v1091 = vadd.f32 %v1077, %v1090
        %1092 = vset.pattern.permute.xlu0 17
        %1093 = vperm.xlu0 %1092, %v848
        %v1094 = vpop.permute.xlu0 %1093
        %v1096 = vlaneseq
        %v1097 = vshrl.u32 %v1096, 7
        %v1098 = vsub.s32 1, %v1097
        %v1099 = vrot.slane %v851, %v1098
        %v1100 = vadd.f32 %v1094, %v1099
        %s1101 = sld [smem:[#allocation7 + $0x11]]
        %v1102 = vtanh.pop %v1100
        %v1103 = vstv %s1101
        %v1104 = vmul.f32 %v1103, %v1102
        %v1105 = vadd.f32 %v1091, %v1104
        %1106 = vset.pattern.permute.xlu0 18
        %1107 = vperm.xlu0 %1106, %v848
        %v1108 = vpop.permute.xlu0 %1107
        %v1110 = vlaneseq
        %v1111 = vshrl.u32 %v1110, 7
        %v1112 = vsub.s32 2, %v1111
        %v1113 = vrot.slane %v851, %v1112
        %v1114 = vadd.f32 %v1108, %v1113
        %s1115 = sld [smem:[#allocation7 + $0x12]]
        %v1116 = vtanh.pop %v1114
        %v1117 = vstv %s1115
        %v1118 = vmul.f32 %v1117, %v1116
        %v1119 = vadd.f32 %v1105, %v1118
        %1120 = vset.pattern.permute.xlu0 19
        %1121 = vperm.xlu0 %1120, %v848
        %v1122 = vpop.permute.xlu0 %1121
        %v1124 = vlaneseq
        %v1125 = vshrl.u32 %v1124, 7
        %v1126 = vsub.s32 3, %v1125
        %v1127 = vrot.slane %v851, %v1126
        %v1128 = vadd.f32 %v1122, %v1127
        %s1129 = sld [smem:[#allocation7 + $0x13]]
        %v1130 = vtanh.pop %v1128
        %v1131 = vstv %s1129
        %v1132 = vmul.f32 %v1131, %v1130
        %v1133 = vadd.f32 %v1119, %v1132
        %1134 = vset.pattern.permute.xlu0 20
        %1135 = vperm.xlu0 %1134, %v848
        %v1136 = vpop.permute.xlu0 %1135
        %v1138 = vlaneseq
        %v1139 = vshrl.u32 %v1138, 7
        %v1140 = vsub.s32 4, %v1139
        %v1141 = vrot.slane %v851, %v1140
        %v1142 = vadd.f32 %v1136, %v1141
        %s1143 = sld [smem:[#allocation7 + $0x14]]
        %v1144 = vtanh.pop %v1142
        %v1145 = vstv %s1143
        %v1146 = vmul.f32 %v1145, %v1144
        %v1147 = vadd.f32 %v1133, %v1146
        %1148 = vset.pattern.permute.xlu0 21
        %1149 = vperm.xlu0 %1148, %v848
        %v1150 = vpop.permute.xlu0 %1149
        %v1152 = vlaneseq
        %v1153 = vshrl.u32 %v1152, 7
        %v1154 = vsub.s32 5, %v1153
        %v1155 = vrot.slane %v851, %v1154
        %v1156 = vadd.f32 %v1150, %v1155
        %s1157 = sld [smem:[#allocation7 + $0x15]]
        %v1158 = vtanh.pop %v1156
        %v1159 = vstv %s1157
        %v1160 = vmul.f32 %v1159, %v1158
        %v1161 = vadd.f32 %v1147, %v1160
        %1162 = vset.pattern.permute.xlu0 22
        %1163 = vperm.xlu0 %1162, %v848
        %v1164 = vpop.permute.xlu0 %1163
        %v1166 = vlaneseq
        %v1167 = vshrl.u32 %v1166, 7
        %v1168 = vsub.s32 6, %v1167
        %v1169 = vrot.slane %v851, %v1168
        %v1170 = vadd.f32 %v1164, %v1169
        %s1171 = sld [smem:[#allocation7 + $0x16]]
        %v1172 = vtanh.pop %v1170
        %v1173 = vstv %s1171
        %v1174 = vmul.f32 %v1173, %v1172
        %v1175 = vadd.f32 %v1161, %v1174
        %1176 = vset.pattern.permute.xlu0 23
        %1177 = vperm.xlu0 %1176, %v848
        %v1178 = vpop.permute.xlu0 %1177
        %v1180 = vlaneseq
        %v1181 = vshrl.u32 %v1180, 7
        %v1182 = vsub.s32 7, %v1181
        %v1183 = vrot.slane %v851, %v1182
        %v1184 = vadd.f32 %v1178, %v1183
        %s1185 = sld [smem:[#allocation7 + $0x17]]
        %v1186 = vtanh.pop %v1184
        %v1187 = vstv %s1185
        %v1188 = vmul.f32 %v1187, %v1186
        %v1189 = vadd.f32 %v1175, %v1188
        %1190 = vset.pattern.permute.xlu0 24
        %1191 = vperm.xlu0 %1190, %v848
        %v1192 = vpop.permute.xlu0 %1191
        %v1194 = vlaneseq
        %v1195 = vshrl.u32 %v1194, 7
        %v1196 = vsub.s32 0, %v1195
        %v1197 = vrot.slane %v852, %v1196
        %v1198 = vadd.f32 %v1192, %v1197
        %s1199 = sld [smem:[#allocation7 + $0x18]]
        %v1200 = vtanh.pop %v1198
        %v1201 = vstv %s1199
        %v1202 = vmul.f32 %v1201, %v1200
        %v1203 = vadd.f32 %v1189, %v1202
        %1204 = vset.pattern.permute.xlu0 25
        %1205 = vperm.xlu0 %1204, %v848
        %v1206 = vpop.permute.xlu0 %1205
        %v1208 = vlaneseq
        %v1209 = vshrl.u32 %v1208, 7
        %v1210 = vsub.s32 1, %v1209
        %v1211 = vrot.slane %v852, %v1210
        %v1212 = vadd.f32 %v1206, %v1211
        %s1213 = sld [smem:[#allocation7 + $0x19]]
        %v1214 = vtanh.pop %v1212
        %v1215 = vstv %s1213
        %v1216 = vmul.f32 %v1215, %v1214
        %v1217 = vadd.f32 %v1203, %v1216
        %1218 = vset.pattern.permute.xlu0 26
        %1219 = vperm.xlu0 %1218, %v848
        %v1220 = vpop.permute.xlu0 %1219
        %v1222 = vlaneseq
        %v1223 = vshrl.u32 %v1222, 7
        %v1224 = vsub.s32 2, %v1223
        %v1225 = vrot.slane %v852, %v1224
        %v1226 = vadd.f32 %v1220, %v1225
        %s1227 = sld [smem:[#allocation7 + $0x1a]]
        %v1228 = vtanh.pop %v1226
        %v1229 = vstv %s1227
        %v1230 = vmul.f32 %v1229, %v1228
        %v1231 = vadd.f32 %v1217, %v1230
        %1232 = vset.pattern.permute.xlu0 27
        %1233 = vperm.xlu0 %1232, %v848
        %v1234 = vpop.permute.xlu0 %1233
        %v1236 = vlaneseq
        %v1237 = vshrl.u32 %v1236, 7
        %v1238 = vsub.s32 3, %v1237
        %v1239 = vrot.slane %v852, %v1238
        %v1240 = vadd.f32 %v1234, %v1239
        %s1241 = sld [smem:[#allocation7 + $0x1b]]
        %v1242 = vtanh.pop %v1240
        %v1243 = vstv %s1241
        %v1244 = vmul.f32 %v1243, %v1242
        %v1245 = vadd.f32 %v1231, %v1244
        %1246 = vset.pattern.permute.xlu0 28
        %1247 = vperm.xlu0 %1246, %v848
        %v1248 = vpop.permute.xlu0 %1247
        %v1250 = vlaneseq
        %v1251 = vshrl.u32 %v1250, 7
        %v1252 = vsub.s32 4, %v1251
        %v1253 = vrot.slane %v852, %v1252
        %v1254 = vadd.f32 %v1248, %v1253
        %s1255 = sld [smem:[#allocation7 + $0x1c]]
        %v1256 = vtanh.pop %v1254
        %v1257 = vstv %s1255
        %v1258 = vmul.f32 %v1257, %v1256
        %v1259 = vadd.f32 %v1245, %v1258
        %1260 = vset.pattern.permute.xlu0 29
        %1261 = vperm.xlu0 %1260, %v848
        %v1262 = vpop.permute.xlu0 %1261
        %v1264 = vlaneseq
        %v1265 = vshrl.u32 %v1264, 7
        %v1266 = vsub.s32 5, %v1265
        %v1267 = vrot.slane %v852, %v1266
        %v1268 = vadd.f32 %v1262, %v1267
        %s1269 = sld [smem:[#allocation7 + $0x1d]]
        %v1270 = vtanh.pop %v1268
        %v1271 = vstv %s1269
        %v1272 = vmul.f32 %v1271, %v1270
        %v1273 = vadd.f32 %v1259, %v1272
        %1274 = vset.pattern.permute.xlu0 30
        %1275 = vperm.xlu0 %1274, %v848
        %v1276 = vpop.permute.xlu0 %1275
        %v1278 = vlaneseq
        %v1279 = vshrl.u32 %v1278, 7
        %v1280 = vsub.s32 6, %v1279
        %v1281 = vrot.slane %v852, %v1280
        %v1282 = vadd.f32 %v1276, %v1281
        %s1283 = sld [smem:[#allocation7 + $0x1e]]
        %v1284 = vtanh.pop %v1282
        %v1285 = vstv %s1283
        %v1286 = vmul.f32 %v1285, %v1284
        %v1287 = vadd.f32 %v1273, %v1286
        %1288 = vset.pattern.permute.xlu0 31
        %1289 = vperm.xlu0 %1288, %v848
        %v1290 = vpop.permute.xlu0 %1289
        %v1292 = vlaneseq
        %v1293 = vshrl.u32 %v1292, 7
        %v1294 = vsub.s32 7, %v1293
        %v1295 = vrot.slane %v852, %v1294
        %v1296 = vadd.f32 %v1290, %v1295
        %s1297 = sld [smem:[#allocation7 + $0x1f]]
        %v1298 = vtanh.pop %v1296
        %v1299 = vstv %s1297
        %v1300 = vmul.f32 %v1299, %v1298
        %v1301 = vadd.f32 %v1287, %v1300
        %v1302 = vmul.f32 %v1301, 0.5
        %s1303 = sld [smem:[#allocation2]]
        %v1304 = vstv %s1303
        %v1305 = vadd.f32 %v1302, %v1304
        %vm1306 = vcmask 195584
        %v1307 = vsel %vm1306, %v1305, -inf
        %1308 = vmax.xlane.f32.xlu0 %v1307
        %v1309 = vpop.xlane.xlu0 %1308
        %v1310 = vsub.f32 %v1305, %v1309
        %v1311 = vmul.f32 %v1310, 1.442695
        %v1312 = vpow.pop %v1311
        %v1313 = vsel %vm1306, %v1312, 0.0
        %1314 = vadd.xlane.f32.xlu0 %v1313
        %v1315 = vpop.xlane.xlu0 %1314
        %v1316 = vld [vmem:[%s2] sm:$0xff]
        %v1317 = vld [vmem:[%s2 + $0x8] sm:$0xff]
        %v1318 = vld [vmem:[%s2 + $0x10] sm:$0xff]
        %v1320 = vsel %vm1306, %v1312, 0
        %1322 = vmatprep.subr.mxu0 0.0
        %v1323 = vand.u32 %v1316, 4294901760
        %1324 = vmatpush1.msra.mxu0 %v1323
        %1325 = vmatprep.subr.mxu0 0.0
        %v1326 = vand.u32 %v1317, 4294901760
        %1327 = vmatpush1.msra.mxu0 %v1326
        %1328 = vmatprep.subr.mxu0 0.0
        %v1329 = vand.u32 %v1318, 4294901760
        %1330 = vmatpush1.msra.mxu0 %v1329
        %1331 = vmatprep.subr.mxu0 0.0
        %1332 = vmatpush1.msra.mxu0 0.0
        %1333 = vmatprep.subr.mxu0 0.0
        %1334 = vmatpush1.msra.mxu0 0.0
        %1335 = vmatprep.subr.mxu0 0.0
        %1336 = vmatpush1.msra.mxu0 0.0
        %1337 = vmatprep.subr.mxu0 0.0
        %1338 = vmatpush1.msra.mxu0 0.0
        %1339 = vmatprep.subr.mxu0 0.0
        %1340 = vmatpush1.msra.mxu0 0.0
        %1341 = vmatprep.subr.mxu0 0.0
        %1342 = vmatpush1.msra.mxu0 0.0
        %1343 = vmatprep.subr.mxu0 0.0
        %1344 = vmatpush1.msra.mxu0 0.0
        %1345 = vmatprep.subr.mxu0 0.0
        %1346 = vmatpush1.msra.mxu0 0.0
        %1347 = vmatprep.subr.mxu0 0.0
        %1348 = vmatpush1.msra.mxu0 0.0
        %1349 = vmatprep.subr.mxu0 0.0
        %1350 = vmatpush1.msra.mxu0 0.0
        %1351 = vmatprep.subr.mxu0 0.0
        %1352 = vmatpush1.msra.mxu0 0.0
        %1353 = vmatprep.subr.mxu0 0.0
        %1354 = vmatpush1.msra.mxu0 0.0
        %1355 = vmatprep.subr.mxu0 0.0
        %1356 = vmatpush1.msra.mxu0 0.0
        %1357 = vmatprep.subr.mxu0 0.0
        %1358 = vmatpush1.msra.mxu0 0.0
        %1359 = vmatprep.subr.mxu0 0.0
        %1360 = vmatpush1.msra.mxu0 0.0
        %1361 = vmatprep.subr.mxu0 0.0
        %1362 = vmatpush1.msra.mxu0 0.0
        %1363 = vmatprep.subr.mxu0 0.0
        %1364 = vmatpush1.msra.mxu0 0.0
        %1365 = vmatprep.subr.mxu0 0.0
        %1366 = vmatpush1.msra.mxu0 0.0
        %1367 = vmatprep.subr.mxu0 0.0
        %1368 = vmatpush1.msra.mxu0 0.0
        %1369 = vmatprep.subr.mxu0 0.0
        %1370 = vmatpush1.msra.mxu0 0.0
        %1371 = vmatprep.subr.mxu0 0.0
        %1372 = vmatpush1.msra.mxu0 0.0
        %1373 = vmatprep.subr.mxu0 0.0
        %1374 = vmatpush1.msra.mxu0 0.0
        %1375 = vmatprep.subr.mxu0 0.0
        %1376 = vmatpush1.msra.mxu0 0.0
        %1377 = vmatprep.subr.mxu0 0.0
        %1378 = vmatpush1.msra.mxu0 0.0
        %1379 = vmatprep.subr.mxu0 0.0
        %1380 = vmatpush1.msra.mxu0 0.0
        %1381 = vmatprep.subr.mxu0 0.0
        %1382 = vmatpush1.msra.mxu0 0.0
        %1383 = vmatprep.subr.mxu0 0.0
        %1384 = vmatpush1.msra.mxu0 0.0
        %1385 = vmatprep.subr.mxu0 0.0
        %1386 = vmatpush1.msra.mxu0 0.0
        %1387 = vmatprep.subr.mxu0 0.0
        %1388 = vmatpush1.msra.mxu0 0.0
        %1389 = vmatprep.mubr.f32.mxu0 0.0
        %v1390 = vand.u32 %v1320, 4294901760
        %v1391 = vsub.f32 %v1320, %v1390
        %v1392 = vand.u32 %v1391, 4294901760
        %v1393 = vsub.f32 %v1391, %v1392
        %v1394 = vand.u32 %v1393, 4294901760
        %1395 = vmatmul.mubr.f32.gmra.mrb[0].mxu0 %v1394
        %v1396 = vpop.f32.mrb[0].mxu0
        %v1397 = vadd.f32 0.0, %v1396
        %v1398 = vpop.f32.mrb[0].mxu0
        %1399 = vdwg.mxu0
        %1400 = vmatprep.subr.mxu0 0.0
        %v1401 = vand.u32 %v1316, 4294901760
        %v1402 = vsub.f32 %v1316, %v1401
        %v1403 = vand.u32 %v1402, 4294901760
        %v1404 = vsub.f32 %v1402, %v1403
        %v1405 = vand.u32 %v1404, 4294901760
        %1406 = vmatpush1.msra.mxu0 %v1405
        %1407 = vmatprep.subr.mxu0 0.0
        %v1408 = vand.u32 %v1317, 4294901760
        %v1409 = vsub.f32 %v1317, %v1408
        %v1410 = vand.u32 %v1409, 4294901760
        %v1411 = vsub.f32 %v1409, %v1410
        %v1412 = vand.u32 %v1411, 4294901760
        %1413 = vmatpush1.msra.mxu0 %v1412
        %1414 = vmatprep.subr.mxu0 0.0
        %v1415 = vand.u32 %v1318, 4294901760
        %v1416 = vsub.f32 %v1318, %v1415
        %v1417 = vand.u32 %v1416, 4294901760
        %v1418 = vsub.f32 %v1416, %v1417
        %v1419 = vand.u32 %v1418, 4294901760
        %1420 = vmatpush1.msra.mxu0 %v1419
        %1421 = vmatprep.subr.mxu0 0.0
        %1422 = vmatpush1.msra.mxu0 0.0
        %1423 = vmatprep.subr.mxu0 0.0
        %1424 = vmatpush1.msra.mxu0 0.0
        %1425 = vmatprep.subr.mxu0 0.0
        %1426 = vmatpush1.msra.mxu0 0.0
        %1427 = vmatprep.subr.mxu0 0.0
        %1428 = vmatpush1.msra.mxu0 0.0
        %1429 = vmatprep.subr.mxu0 0.0
        %1430 = vmatpush1.msra.mxu0 0.0
        %1431 = vmatprep.subr.mxu0 0.0
        %1432 = vmatpush1.msra.mxu0 0.0
        %1433 = vmatprep.subr.mxu0 0.0
        %1434 = vmatpush1.msra.mxu0 0.0
        %1435 = vmatprep.subr.mxu0 0.0
        %1436 = vmatpush1.msra.mxu0 0.0
        %1437 = vmatprep.subr.mxu0 0.0
        %1438 = vmatpush1.msra.mxu0 0.0
        %1439 = vmatprep.subr.mxu0 0.0
        %1440 = vmatpush1.msra.mxu0 0.0
        %1441 = vmatprep.subr.mxu0 0.0
        %1442 = vmatpush1.msra.mxu0 0.0
        %1443 = vmatprep.subr.mxu0 0.0
        %1444 = vmatpush1.msra.mxu0 0.0
        %1445 = vmatprep.subr.mxu0 0.0
        %1446 = vmatpush1.msra.mxu0 0.0
        %1447 = vmatprep.subr.mxu0 0.0
        %1448 = vmatpush1.msra.mxu0 0.0
        %1449 = vmatprep.subr.mxu0 0.0
        %1450 = vmatpush1.msra.mxu0 0.0
        %1451 = vmatprep.subr.mxu0 0.0
        %1452 = vmatpush1.msra.mxu0 0.0
        %1453 = vmatprep.subr.mxu0 0.0
        %1454 = vmatpush1.msra.mxu0 0.0
        %1455 = vmatprep.subr.mxu0 0.0
        %1456 = vmatpush1.msra.mxu0 0.0
        %1457 = vmatprep.subr.mxu0 0.0
        %1458 = vmatpush1.msra.mxu0 0.0
        %1459 = vmatprep.subr.mxu0 0.0
        %1460 = vmatpush1.msra.mxu0 0.0
        %1461 = vmatprep.subr.mxu0 0.0
        %1462 = vmatpush1.msra.mxu0 0.0
        %1463 = vmatprep.subr.mxu0 0.0
        %1464 = vmatpush1.msra.mxu0 0.0
        %1465 = vmatprep.subr.mxu0 0.0
        %1466 = vmatpush1.msra.mxu0 0.0
        %1467 = vmatprep.subr.mxu0 0.0
        %1468 = vmatpush1.msra.mxu0 0.0
        %1469 = vmatprep.subr.mxu0 0.0
        %1470 = vmatpush1.msra.mxu0 0.0
        %1471 = vmatprep.subr.mxu0 0.0
        %1472 = vmatpush1.msra.mxu0 0.0
        %1473 = vmatprep.subr.mxu0 0.0
        %1474 = vmatpush1.msra.mxu0 0.0
        %1475 = vmatprep.subr.mxu0 0.0
        %1476 = vmatpush1.msra.mxu0 0.0
        %1477 = vmatprep.subr.mxu0 0.0
        %1478 = vmatpush1.msra.mxu0 0.0
        %1479 = vmatprep.mubr.f32.mxu0 0.0
        %v1480 = vand.u32 %v1320, 4294901760
        %1481 = vmatmul.mubr.f32.gmra.mrb[0].mxu0 %v1480
        %v1482 = vpop.f32.mrb[0].mxu0
        %v1483 = vadd.f32 %v1397, %v1482
        %v1484 = vpop.f32.mrb[0].mxu0
        %1485 = vdwg.mxu0
        %1486 = vmatprep.subr.mxu0 0.0
        %v1487 = vand.u32 %v1316, 4294901760
        %v1488 = vsub.f32 %v1316, %v1487
        %1489 = vmatpush1.msra.mxu0 %v1488
        %1490 = vmatprep.subr.mxu0 0.0
        %v1491 = vand.u32 %v1317, 4294901760
        %v1492 = vsub.f32 %v1317, %v1491
        %1493 = vmatpush1.msra.mxu0 %v1492
        %1494 = vmatprep.subr.mxu0 0.0
        %v1495 = vand.u32 %v1318, 4294901760
        %v1496 = vsub.f32 %v1318, %v1495
        %1497 = vmatpush1.msra.mxu0 %v1496
        %1498 = vmatprep.subr.mxu0 0.0
        %1499 = vmatpush1.msra.mxu0 0.0
        %1500 = vmatprep.subr.mxu0 0.0
        %1501 = vmatpush1.msra.mxu0 0.0
        %1502 = vmatprep.subr.mxu0 0.0
        %1503 = vmatpush1.msra.mxu0 0.0
        %1504 = vmatprep.subr.mxu0 0.0
        %1505 = vmatpush1.msra.mxu0 0.0
        %1506 = vmatprep.subr.mxu0 0.0
        %1507 = vmatpush1.msra.mxu0 0.0
        %1508 = vmatprep.subr.mxu0 0.0
        %1509 = vmatpush1.msra.mxu0 0.0
        %1510 = vmatprep.subr.mxu0 0.0
        %1511 = vmatpush1.msra.mxu0 0.0
        %1512 = vmatprep.subr.mxu0 0.0
        %1513 = vmatpush1.msra.mxu0 0.0
        %1514 = vmatprep.subr.mxu0 0.0
        %1515 = vmatpush1.msra.mxu0 0.0
        %1516 = vmatprep.subr.mxu0 0.0
        %1517 = vmatpush1.msra.mxu0 0.0
        %1518 = vmatprep.subr.mxu0 0.0
        %1519 = vmatpush1.msra.mxu0 0.0
        %1520 = vmatprep.subr.mxu0 0.0
        %1521 = vmatpush1.msra.mxu0 0.0
        %1522 = vmatprep.subr.mxu0 0.0
        %1523 = vmatpush1.msra.mxu0 0.0
        %1524 = vmatprep.subr.mxu0 0.0
        %1525 = vmatpush1.msra.mxu0 0.0
        %1526 = vmatprep.subr.mxu0 0.0
        %1527 = vmatpush1.msra.mxu0 0.0
        %1528 = vmatprep.subr.mxu0 0.0
        %1529 = vmatpush1.msra.mxu0 0.0
        %1530 = vmatprep.subr.mxu0 0.0
        %1531 = vmatpush1.msra.mxu0 0.0
        %1532 = vmatprep.subr.mxu0 0.0
        %1533 = vmatpush1.msra.mxu0 0.0
        %1534 = vmatprep.subr.mxu0 0.0
        %1535 = vmatpush1.msra.mxu0 0.0
        %1536 = vmatprep.subr.mxu0 0.0
        %1537 = vmatpush1.msra.mxu0 0.0
        %1538 = vmatprep.subr.mxu0 0.0
        %1539 = vmatpush1.msra.mxu0 0.0
        %1540 = vmatprep.subr.mxu0 0.0
        %1541 = vmatpush1.msra.mxu0 0.0
        %1542 = vmatprep.subr.mxu0 0.0
        %1543 = vmatpush1.msra.mxu0 0.0
        %1544 = vmatprep.subr.mxu0 0.0
        %1545 = vmatpush1.msra.mxu0 0.0
        %1546 = vmatprep.subr.mxu0 0.0
        %1547 = vmatpush1.msra.mxu0 0.0
        %1548 = vmatprep.subr.mxu0 0.0
        %1549 = vmatpush1.msra.mxu0 0.0
        %1550 = vmatprep.subr.mxu0 0.0
        %1551 = vmatpush1.msra.mxu0 0.0
        %1552 = vmatprep.subr.mxu0 0.0
        %1553 = vmatpush1.msra.mxu0 0.0
        %1554 = vmatprep.subr.mxu0 0.0
        %1555 = vmatpush1.msra.mxu0 0.0
        %1556 = vmatprep.mubr.f32.mxu0 0.0
        %v1557 = vand.u32 %v1320, 4294901760
        %v1558 = vsub.f32 %v1320, %v1557
        %1559 = vmatmul.mubr.f32.gmra.mrb[0].mxu0 %v1558
        %v1560 = vpop.f32.mrb[0].mxu0
        %v1561 = vadd.f32 %v1483, %v1560
        %v1562 = vpop.f32.mrb[0].mxu0
        %1563 = vdwg.mxu0
        %1564 = vmatprep.subr.mxu0 0.0
        %v1565 = vand.u32 %v1316, 4294901760
        %1566 = vmatpush1.msra.mxu0 %v1565
        %1567 = vmatprep.subr.mxu0 0.0
        %v1568 = vand.u32 %v1317, 4294901760
        %1569 = vmatpush1.msra.mxu0 %v1568
        %1570 = vmatprep.subr.mxu0 0.0
        %v1571 = vand.u32 %v1318, 4294901760
        %1572 = vmatpush1.msra.mxu0 %v1571
        %1573 = vmatprep.subr.mxu0 0.0
        %1574 = vmatpush1.msra.mxu0 0.0
        %1575 = vmatprep.subr.mxu0 0.0
        %1576 = vmatpush1.msra.mxu0 0.0
        %1577 = vmatprep.subr.mxu0 0.0
        %1578 = vmatpush1.msra.mxu0 0.0
        %1579 = vmatprep.subr.mxu0 0.0
        %1580 = vmatpush1.msra.mxu0 0.0
        %1581 = vmatprep.subr.mxu0 0.0
        %1582 = vmatpush1.msra.mxu0 0.0
        %1583 = vmatprep.subr.mxu0 0.0
        %1584 = vmatpush1.msra.mxu0 0.0
        %1585 = vmatprep.subr.mxu0 0.0
        %1586 = vmatpush1.msra.mxu0 0.0
        %1587 = vmatprep.subr.mxu0 0.0
        %1588 = vmatpush1.msra.mxu0 0.0
        %1589 = vmatprep.subr.mxu0 0.0
        %1590 = vmatpush1.msra.mxu0 0.0
        %1591 = vmatprep.subr.mxu0 0.0
        %1592 = vmatpush1.msra.mxu0 0.0
        %1593 = vmatprep.subr.mxu0 0.0
        %1594 = vmatpush1.msra.mxu0 0.0
        %1595 = vmatprep.subr.mxu0 0.0
        %1596 = vmatpush1.msra.mxu0 0.0
        %1597 = vmatprep.subr.mxu0 0.0
        %1598 = vmatpush1.msra.mxu0 0.0
        %1599 = vmatprep.subr.mxu0 0.0
        %1600 = vmatpush1.msra.mxu0 0.0
        %1601 = vmatprep.subr.mxu0 0.0
        %1602 = vmatpush1.msra.mxu0 0.0
        %1603 = vmatprep.subr.mxu0 0.0
        %1604 = vmatpush1.msra.mxu0 0.0
        %1605 = vmatprep.subr.mxu0 0.0
        %1606 = vmatpush1.msra.mxu0 0.0
        %1607 = vmatprep.subr.mxu0 0.0
        %1608 = vmatpush1.msra.mxu0 0.0
        %1609 = vmatprep.subr.mxu0 0.0
        %1610 = vmatpush1.msra.mxu0 0.0
        %1611 = vmatprep.subr.mxu0 0.0
        %1612 = vmatpush1.msra.mxu0 0.0
        %1613 = vmatprep.subr.mxu0 0.0
        %1614 = vmatpush1.msra.mxu0 0.0
        %1615 = vmatprep.subr.mxu0 0.0
        %1616 = vmatpush1.msra.mxu0 0.0
        %1617 = vmatprep.subr.mxu0 0.0
        %1618 = vmatpush1.msra.mxu0 0.0
        %1619 = vmatprep.subr.mxu0 0.0
        %1620 = vmatpush1.msra.mxu0 0.0
        %1621 = vmatprep.subr.mxu0 0.0
        %1622 = vmatpush1.msra.mxu0 0.0
        %1623 = vmatprep.subr.mxu0 0.0
        %1624 = vmatpush1.msra.mxu0 0.0
        %1625 = vmatprep.subr.mxu0 0.0
        %1626 = vmatpush1.msra.mxu0 0.0
        %1627 = vmatprep.subr.mxu0 0.0
        %1628 = vmatpush1.msra.mxu0 0.0
        %1629 = vmatprep.subr.mxu0 0.0
        %1630 = vmatpush1.msra.mxu0 0.0
        %1631 = vmatprep.mubr.f32.mxu0 0.0
        %v1632 = vand.u32 %v1320, 4294901760
        %v1633 = vsub.f32 %v1320, %v1632
        %v1634 = vand.u32 %v1633, 4294901760
        %1635 = vmatmul.mubr.f32.gmra.mrb[0].mxu0 %v1634
        %v1636 = vpop.f32.mrb[0].mxu0
        %v1637 = vadd.f32 %v1561, %v1636
        %v1638 = vpop.f32.mrb[0].mxu0
        %1639 = vdwg.mxu0
        %1640 = vmatprep.subr.mxu0 0.0
        %v1641 = vand.u32 %v1316, 4294901760
        %v1642 = vsub.f32 %v1316, %v1641
        %v1643 = vand.u32 %v1642, 4294901760
        %1644 = vmatpush1.msra.mxu0 %v1643
        %1645 = vmatprep.subr.mxu0 0.0
        %v1646 = vand.u32 %v1317, 4294901760
        %v1647 = vsub.f32 %v1317, %v1646
        %v1648 = vand.u32 %v1647, 4294901760
        %1649 = vmatpush1.msra.mxu0 %v1648
        %1650 = vmatprep.subr.mxu0 0.0
        %v1651 = vand.u32 %v1318, 4294901760
        %v1652 = vsub.f32 %v1318, %v1651
        %v1653 = vand.u32 %v1652, 4294901760
        %1654 = vmatpush1.msra.mxu0 %v1653
        %1655 = vmatprep.subr.mxu0 0.0
        %1656 = vmatpush1.msra.mxu0 0.0
        %1657 = vmatprep.subr.mxu0 0.0
        %1658 = vmatpush1.msra.mxu0 0.0
        %1659 = vmatprep.subr.mxu0 0.0
        %1660 = vmatpush1.msra.mxu0 0.0
        %1661 = vmatprep.subr.mxu0 0.0
        %1662 = vmatpush1.msra.mxu0 0.0
        %1663 = vmatprep.subr.mxu0 0.0
        %1664 = vmatpush1.msra.mxu0 0.0
        %1665 = vmatprep.subr.mxu0 0.0
        %1666 = vmatpush1.msra.mxu0 0.0
        %1667 = vmatprep.subr.mxu0 0.0
        %1668 = vmatpush1.msra.mxu0 0.0
        %1669 = vmatprep.subr.mxu0 0.0
        %1670 = vmatpush1.msra.mxu0 0.0
        %1671 = vmatprep.subr.mxu0 0.0
        %1672 = vmatpush1.msra.mxu0 0.0
        %1673 = vmatprep.subr.mxu0 0.0
        %1674 = vmatpush1.msra.mxu0 0.0
        %1675 = vmatprep.subr.mxu0 0.0
        %1676 = vmatpush1.msra.mxu0 0.0
        %1677 = vmatprep.subr.mxu0 0.0
        %1678 = vmatpush1.msra.mxu0 0.0
        %1679 = vmatprep.subr.mxu0 0.0
        %1680 = vmatpush1.msra.mxu0 0.0
        %1681 = vmatprep.subr.mxu0 0.0
        %1682 = vmatpush1.msra.mxu0 0.0
        %1683 = vmatprep.subr.mxu0 0.0
        %1684 = vmatpush1.msra.mxu0 0.0
        %1685 = vmatprep.subr.mxu0 0.0
        %1686 = vmatpush1.msra.mxu0 0.0
        %1687 = vmatprep.subr.mxu0 0.0
        %1688 = vmatpush1.msra.mxu0 0.0
        %1689 = vmatprep.subr.mxu0 0.0
        %1690 = vmatpush1.msra.mxu0 0.0
        %1691 = vmatprep.subr.mxu0 0.0
        %1692 = vmatpush1.msra.mxu0 0.0
        %1693 = vmatprep.subr.mxu0 0.0
        %1694 = vmatpush1.msra.mxu0 0.0
        %1695 = vmatprep.subr.mxu0 0.0
        %1696 = vmatpush1.msra.mxu0 0.0
        %1697 = vmatprep.subr.mxu0 0.0
        %1698 = vmatpush1.msra.mxu0 0.0
        %1699 = vmatprep.subr.mxu0 0.0
        %1700 = vmatpush1.msra.mxu0 0.0
        %1701 = vmatprep.subr.mxu0 0.0
        %1702 = vmatpush1.msra.mxu0 0.0
        %1703 = vmatprep.subr.mxu0 0.0
        %1704 = vmatpush1.msra.mxu0 0.0
        %1705 = vmatprep.subr.mxu0 0.0
        %1706 = vmatpush1.msra.mxu0 0.0
        %1707 = vmatprep.subr.mxu0 0.0
        %1708 = vmatpush1.msra.mxu0 0.0
        %1709 = vmatprep.subr.mxu0 0.0
        %1710 = vmatpush1.msra.mxu0 0.0
        %1711 = vmatprep.subr.mxu0 0.0
        %1712 = vmatpush1.msra.mxu0 0.0
        %1713 = vmatprep.mubr.f32.mxu0 0.0
        %v1714 = vand.u32 %v1320, 4294901760
        %1715 = vmatmul.mubr.f32.gmra.mrb[0].mxu0 %v1714
        %v1716 = vpop.f32.mrb[0].mxu0
        %v1717 = vadd.f32 %v1637, %v1716
        %v1718 = vpop.f32.mrb[0].mxu0
        %1719 = vdwg.mxu0
        %1720 = vmatprep.subr.mxu0 0.0
        %v1721 = vand.u32 %v1316, 4294901760
        %1722 = vmatpush1.msra.mxu0 %v1721
        %1723 = vmatprep.subr.mxu0 0.0
        %v1724 = vand.u32 %v1317, 4294901760
        %1725 = vmatpush1.msra.mxu0 %v1724
        %1726 = vmatprep.subr.mxu0 0.0
        %v1727 = vand.u32 %v1318, 4294901760
        %1728 = vmatpush1.msra.mxu0 %v1727
        %1729 = vmatprep.subr.mxu0 0.0
        %1730 = vmatpush1.msra.mxu0 0.0
        %1731 = vmatprep.subr.mxu0 0.0
        %1732 = vmatpush1.msra.mxu0 0.0
        %1733 = vmatprep.subr.mxu0 0.0
        %1734 = vmatpush1.msra.mxu0 0.0
        %1735 = vmatprep.subr.mxu0 0.0
        %1736 = vmatpush1.msra.mxu0 0.0
        %1737 = vmatprep.subr.mxu0 0.0
        %1738 = vmatpush1.msra.mxu0 0.0
        %1739 = vmatprep.subr.mxu0 0.0
        %1740 = vmatpush1.msra.mxu0 0.0
        %1741 = vmatprep.subr.mxu0 0.0
        %1742 = vmatpush1.msra.mxu0 0.0
        %1743 = vmatprep.subr.mxu0 0.0
        %1744 = vmatpush1.msra.mxu0 0.0
        %1745 = vmatprep.subr.mxu0 0.0
        %1746 = vmatpush1.msra.mxu0 0.0
        %1747 = vmatprep.subr.mxu0 0.0
        %1748 = vmatpush1.msra.mxu0 0.0
        %1749 = vmatprep.subr.mxu0 0.0
        %1750 = vmatpush1.msra.mxu0 0.0
        %1751 = vmatprep.subr.mxu0 0.0
        %1752 = vmatpush1.msra.mxu0 0.0
        %1753 = vmatprep.subr.mxu0 0.0
        %1754 = vmatpush1.msra.mxu0 0.0
        %1755 = vmatprep.subr.mxu0 0.0
        %1756 = vmatpush1.msra.mxu0 0.0
        %1757 = vmatprep.subr.mxu0 0.0
        %1758 = vmatpush1.msra.mxu0 0.0
        %1759 = vmatprep.subr.mxu0 0.0
        %1760 = vmatpush1.msra.mxu0 0.0
        %1761 = vmatprep.subr.mxu0 0.0
        %1762 = vmatpush1.msra.mxu0 0.0
        %1763 = vmatprep.subr.mxu0 0.0
        %1764 = vmatpush1.msra.mxu0 0.0
        %1765 = vmatprep.subr.mxu0 0.0
        %1766 = vmatpush1.msra.mxu0 0.0
        %1767 = vmatprep.subr.mxu0 0.0
        %1768 = vmatpush1.msra.mxu0 0.0
        %1769 = vmatprep.subr.mxu0 0.0
        %1770 = vmatpush1.msra.mxu0 0.0
        %1771 = vmatprep.subr.mxu0 0.0
        %1772 = vmatpush1.msra.mxu0 0.0
        %1773 = vmatprep.subr.mxu0 0.0
        %1774 = vmatpush1.msra.mxu0 0.0
        %1775 = vmatprep.subr.mxu0 0.0
        %1776 = vmatpush1.msra.mxu0 0.0
        %1777 = vmatprep.subr.mxu0 0.0
        %1778 = vmatpush1.msra.mxu0 0.0
        %1779 = vmatprep.subr.mxu0 0.0
        %1780 = vmatpush1.msra.mxu0 0.0
        %1781 = vmatprep.subr.mxu0 0.0
        %1782 = vmatpush1.msra.mxu0 0.0
        %1783 = vmatprep.subr.mxu0 0.0
        %1784 = vmatpush1.msra.mxu0 0.0
        %1785 = vmatprep.subr.mxu0 0.0
        %1786 = vmatpush1.msra.mxu0 0.0
        %1787 = vmatprep.mubr.f32.mxu0 0.0
        %v1788 = vand.u32 %v1320, 4294901760
        %1789 = vmatmul.mubr.f32.gmra.mrb[0].mxu0 %v1788
        %v1790 = vpop.f32.mrb[0].mxu0
        %v1791 = vadd.f32 %v1717, %v1790
        %v1792 = vpop.f32.mrb[0].mxu0
        %1793 = vdwg.mxu0
        %v1794 = vrcp.pop %v1315
        %v1795 = vmul.f32 %v1791, %v1794
        %1796 = vst.msk [vmem:[%s339] sm:$0xff] %vm359, %v1795
        %1797 = vst.msk [vmem:[%s346] sm:$0xff] %vm1306, %v1305
        %s1798 = sand.u32 %s191, 1
        %s1799 = scalar_lea.sflag [#allocation5], %s1798
        %s1800 = sand.u32 %s191, 1
        %s1801 = smul.addr %s1800, 8
        %s1802 = scalar_lea.vmem [#allocation8], %s1801
        %s1803 = sand.u32 %s217, 1
        %s1804 = scalar_lea.sflag [#allocation10], %s1803
        %s1805 = sand.u32 %s217, 1
        %s1806 = smul.addr %s1805, 8
        %s1807 = scalar_lea.vmem [#allocation9], %s1806
        // Predicated region
        $region57: #{tpu_custom_call.1} parent=47 // pred_check
          %p1808 = pneg %p201
        $region58: #{tpu_custom_call.1} parent=47 // pred_check_branch
          %1810 = sbr.rel (%p1808) target = $region60
        $region59: #{tpu_custom_call.1} parent=47 // pred_region
          %s1812 = ssub.s32 128, 128
          %1813 = vsyncadd %s1799, %s1812
          %s1814 = smul.addr %s31, 128
          %s1815 = scalar_lea.hbm %s7, %s1814
          %s1817 = sshll.u32 %s1802, 4
          %s1818 = int_to_ptr.vmem [resolvable:$true] %s1817
          %1820 = dma.vmem_to_hbm [thread:$0]  %s1818, 128, %s1815, %s1799
        $region60: #{tpu_custom_call.1} parent=47 // pred_fallthru
          _
        // Predicated region
        $region61: #{tpu_custom_call.1} parent=47 // pred_check
          %p1821 = pneg %p227
        $region62: #{tpu_custom_call.1} parent=47 // pred_check_branch
          %1823 = sbr.rel (%p1821) target = $region64
        $region63: #{tpu_custom_call.1} parent=47 // pred_region
          %s1825 = ssub.s32 128, 128
          %1826 = vsyncadd %s1804, %s1825
          %s1827 = smul.addr %s31, 128
          %s1828 = scalar_lea.hbm %s8, %s1827
          %s1830 = sshll.u32 %s1807, 4
          %s1831 = int_to_ptr.vmem [resolvable:$true] %s1830
          %1833 = dma.vmem_to_hbm [thread:$0]  %s1831, 128, %s1828, %s1804
        $region64: #{tpu_custom_call.1} parent=47 // pred_fallthru
          _
      $region48: #{tpu_custom_call.1} parent=5 // pred_fallthru
        _
      %p1834 = scmp.le.s32.totalorder 2, %s26
      // Predicated region
      $region65: #{tpu_custom_call.1} parent=5 // pred_check
        %p1835 = pneg %p1834
      $region66: #{tpu_custom_call.1} parent=5 // pred_check_branch
        %1837 = sbr.rel (%p1835) target = $region68
      $region67: #{tpu_custom_call.1} parent=5 // pred_region
        %s1838 = ssub.s32 %s26, 2
        // Predicated region
        $region69: #{tpu_custom_call.1} parent=67 // pred_check
          %p1839 = pneg %p207
        $region70: #{tpu_custom_call.1} parent=67 // pred_check_branch
          %1841 = sbr.rel (%p1839) target = $region72
        $region71: #{tpu_custom_call.1} parent=67 // pred_region
          %s1842 = sand.u32 %s192, 1
          %s1843 = scalar_lea.sflag [#allocation5], %s1842
          %s1844 = sand.u32 %s192, 1
          %s1845 = smul.addr %s1844, 8
          %s1846 = scalar_lea.vmem [#allocation8], %s1845
          %1847 = dma.done %s1843, 128
        $region72: #{tpu_custom_call.1} parent=67 // pred_fallthru
          _
        // Predicated region
        $region73: #{tpu_custom_call.1} parent=67 // pred_check
          %p1848 = pneg %p233
        $region74: #{tpu_custom_call.1} parent=67 // pred_check_branch
          %1850 = sbr.rel (%p1848) target = $region76
        $region75: #{tpu_custom_call.1} parent=67 // pred_region
          %s1851 = sand.u32 %s218, 1
          %s1852 = scalar_lea.sflag [#allocation10], %s1851
          %s1853 = sand.u32 %s218, 1
          %s1854 = smul.addr %s1853, 8
          %s1855 = scalar_lea.vmem [#allocation9], %s1854
          %1856 = dma.done %s1852, 128
        $region76: #{tpu_custom_call.1} parent=67 // pred_fallthru
          _
      $region68: #{tpu_custom_call.1} parent=5 // pred_fallthru
        _
    $region6: #{tpu_custom_call.1} parent=1 // loop_footer
      %s30 = sadd.s32 1, %s26
    $region7: #{tpu_custom_call.1} parent=1 // loop_footer_branch
      %25 = sbr.rel target = $region3
    $region8: #{tpu_custom_call.1} parent=1 // loop_exit
      _
    %1857 = vsyncpa [#allocation4], 1
    %s1858 = scalar_lea.sflag [#allocation4], 1
    %1859 = vsyncpa %s1858, 1
    %1860 = vsyncpa [#allocation5], 1
    %s1861 = scalar_lea.sflag [#allocation5], 1
    %1862 = vsyncpa %s1861, 1
    %1863 = vsyncpa [#allocation10], 1
    %s1864 = scalar_lea.sflag [#allocation10], 1
    %1865 = vsyncpa %s1864, 1
    %1866 = vsyncpa [#allocation6], 1
    %s1867 = scalar_lea.sflag [#allocation6], 1
    %1868 = vsyncpa %s1867, 1

</llo_original>
